<compile_context>
chip_gen: v6e
topology: v6e:2x2x1
jax: 0.10.0
libtpu: 0.0.40
codegen_flags: <defaults>
</compile_context>

<pallas_src>
import math

import jax
import jax.numpy as jnp
from jax.experimental import pallas as pl
from jax.experimental.pallas import tpu as pltpu

# ----------------------------- model hyper-params -----------------------------
INPUT_DIM = 4
OUTPUT_DIM = 6
SEQ_LEN = 8
D_MODEL = 32
NUM_LAYERS = 2
D_STATE = 16
D_CONV = 4
EXPAND = 2
D_INNER = EXPAND * D_MODEL
DT_RANK = math.ceil(D_MODEL / 16)
BATCH = 2
BL = BATCH * SEQ_LEN

# Row indices inside the packed (8, 128) small-vector slab.
_ROW_EMB_B = 0                         # emb_b @ in_proj_w[0]         (128 wide)
_ROW_CONV_B = 1                        # conv_b, one row per layer    (64 wide)
_ROW_DT_B = 1 + NUM_LAYERS             # dt_proj_b, one row per layer (64 wide)
_ROW_D = 1 + 2 * NUM_LAYERS            # D skip,    one row per layer (64 wide)
_ROW_HEAD_B = 1 + 3 * NUM_LAYERS       # head bias                    (6 wide)
_VEC_ROWS = -(-(2 + 3 * NUM_LAYERS) // 8) * 8   # -> 8 for NUM_LAYERS=2


# --------------------------------- fused kernel --------------------------------
def _mamba_model_kernel(x_ref, w_emb_in_ref, vec_ref, conv_w_ref, w_dbc_ref,
                        A_ref, w_fused_ref, w_out_head_ref, o_ref):
    f32 = jnp.float32
    vec = vec_ref[...]                                             # (8, 128)

    # Embedding folded into layer-0 in_proj:  xz0 = x @ (Wemb@Win0) + bemb@Win0
    xz = (jnp.dot(x_ref[...], w_emb_in_ref[...], preferred_element_type=f32)
          + vec[_ROW_EMB_B:_ROW_EMB_B + 1, :])                     # (BL, 2*Din)

    for l in range(NUM_LAYERS):
        last_layer = (l == NUM_LAYERS - 1)
        conv_b = vec[_ROW_CONV_B + l:_ROW_CONV_B + l + 1, :D_INNER]
        dt_b = vec[_ROW_DT_B + l:_ROW_DT_B + l + 1, :D_INNER]
        d_skip = vec[_ROW_D + l:_ROW_D + l + 1, :D_INNER]

        # split into x / z (upper-half lane slice of z: cheap XLU work, accepted)
        xpart = xz[:, :D_INNER]                                    # (BL, Din)
        z3 = xz[:, D_INNER:].reshape(BATCH, SEQ_LEN, D_INNER)      # (B, L, Din)

        # ----- causal depthwise conv1d + SiLU, entirely on values -----
        x3 = xpart.reshape(BATCH, SEQ_LEN, D_INNER)
        xpad = jnp.concatenate(
            [jnp.zeros((BATCH, D_CONV - 1, D_INNER), f32), x3], axis=1)
        w_conv = conv_w_ref[l]                                     # (K, Din)
        acc = conv_b
        for k in range(D_CONV):
            acc = acc + w_conv[k:k + 1, :] * xpad[:, k:k + SEQ_LEN, :]
        xc3 = acc * jax.nn.sigmoid(acc)                            # SiLU, (B,L,Din)

        # ----- single fused projection: [delta | B | C] -----
        dbc = jnp.dot(xc3.reshape(BL, D_INNER), w_dbc_ref[l],
                      preferred_element_type=f32)                  # (BL, Din+2N)
        delta3 = jax.nn.softplus(dbc[:, :D_INNER] + dt_b).reshape(
            BATCH, SEQ_LEN, D_INNER)
        Bm = dbc[:, D_INNER:D_INNER + D_STATE].reshape(BATCH, SEQ_LEN, D_STATE)
        Cm = dbc[:, D_INNER + D_STATE:].reshape(BATCH, SEQ_LEN, D_STATE)

        # ----- hoist all time-parallel work out of the serial scan -----
        A_l = A_ref[l]                                             # (N, Din)
        dA = jnp.exp(delta3[:, :, None, :] * A_l[None, None, :, :])    # (B,L,N,Din)
        dBu = Bm[:, :, :, None] * (delta3 * xc3)[:, :, None, :]        # (B,L,N,Din)
        Cm4 = Cm[:, :, :, None]                                        # (B,L,N,1)

        # ----- selective scan: serial chain is one FMA (+ reduce) per step -----
        hstate = jnp.zeros((BATCH, D_STATE, D_INNER), f32)
        ys = []
        for t in range(SEQ_LEN):
            hstate = dA[:, t] * hstate + dBu[:, t]
            if not last_layer:
                ys.append(jnp.sum(hstate * Cm4[:, t], axis=1))     # (B, Din)

        if not last_layer:
            # full-sequence output, gated, then out_proj folded into next in_proj
            y3 = jnp.stack(ys, axis=1)                             # (B, L, Din)
            y3 = (y3 + d_skip * xc3) * (z3 * jax.nn.sigmoid(z3))
            xz = jnp.dot(y3.reshape(BL, D_INNER), w_fused_ref[l],
                         preferred_element_type=f32)               # (BL, 2*Din)
        else:
            # only the last token feeds the head; out_proj folded into head_w
            y_last = jnp.sum(hstate * Cm4[:, SEQ_LEN - 1], axis=1)     # (B, Din)
            xc_last = xc3[:, SEQ_LEN - 1, :]
            z_last = z3[:, SEQ_LEN - 1, :]
            y_last = (y_last + d_skip * xc_last) * (z_last * jax.nn.sigmoid(z_last))
            head_b = vec[_ROW_HEAD_B:_ROW_HEAD_B + 1, :OUTPUT_DIM]
            # Dropout is identity in eval mode.
            o_ref[...] = (jnp.dot(y_last, w_out_head_ref[...],
                                  preferred_element_type=f32) + head_b)


def _full_spec(shape):
    if len(shape) == 2:
        return pl.BlockSpec(shape, lambda i: (0, 0))
    return pl.BlockSpec(shape, lambda i: (0, 0, 0))


def _pad_row(v, width=128):
    return jnp.pad(v, ((0, 0), (0, width - v.shape[1])))


# ----------------------------------- wrapper ------------------------------------
def mamba_model(x, params):
    layers = params["layers"]
    in_proj_w = [p["in_proj_w"] for p in layers]
    out_proj_w = [p["out_proj_w"] for p in layers]

    # --- algebraic folds (exact: no nonlinearity between the folded linears) ---
    w_emb_in = params["emb_w"] @ in_proj_w[0]                     # (in, 2*Din)
    b_emb_in = params["emb_b"] @ in_proj_w[0]                     # (1, 2*Din)
    w_fused = jnp.stack([out_proj_w[l] @ in_proj_w[l + 1]
                         for l in range(NUM_LAYERS - 1)])         # (NL-1, Din, 2*Din)
    w_out_head = out_proj_w[-1] @ params["head_w"]                # (Din, out)
    w_dbc = jnp.stack([
        jnp.concatenate([p["x_proj_w"][:, :DT_RANK] @ p["dt_proj_w"],   # dt fold
                         p["x_proj_w"][:, DT_RANK:]], axis=1)            # [B | C]
        for p in layers])                                         # (NL, Din, Din+2N)

    conv_w = jnp.stack([p["conv_w"] for p in layers])             # (NL, K, Din)
    A_t = jnp.stack([p["A_t"] for p in layers])                   # (NL, N, Din)

    # --- pack every tiny bias / skip vector into one lane-dense (8,128) slab ---
    rows = [_pad_row(b_emb_in)]
    rows += [_pad_row(p["conv_b"]) for p in layers]
    rows += [_pad_row(p["dt_proj_b"]) for p in layers]
    rows += [_pad_row(p["D"]) for p in layers]
    rows += [_pad_row(params["head_b"])]
    vec = jnp.concatenate(rows, axis=0)
    vec = jnp.pad(vec, ((0, _VEC_ROWS - vec.shape[0]), (0, 0)))

    x2 = x.reshape(BL, INPUT_DIM)
    operands = (x2, w_emb_in, vec, conv_w, w_dbc, A_t, w_fused, w_out_head)

    return pl.pallas_call(
        _mamba_model_kernel,
        out_shape=jax.ShapeDtypeStruct((BATCH, OUTPUT_DIM), jnp.float32),
        grid=(1,),
        in_specs=[_full_spec(op.shape) for op in operands],
        out_specs=_full_spec((BATCH, OUTPUT_DIM)),
        compiler_params=pltpu.CompilerParams(
            dimension_semantics=("arbitrary",)),
    )(*operands)


# ------------------------------- parameter init --------------------------------
def init_params(key):
    def dense(k, fan_in, fan_out):
        k1, k2 = jax.random.split(k)
        bound = 1.0 / math.sqrt(fan_in)
        w = jax.random.uniform(k1, (fan_in, fan_out), jnp.float32, -bound, bound)
        b = jax.random.uniform(k2, (1, fan_out), jnp.float32, -bound, bound)
        return w, b

    keys = jax.random.split(key, 2 + NUM_LAYERS)
    emb_w, emb_b = dense(keys[0], INPUT_DIM, D_MODEL)
    head_w, head_b = dense(keys[1], D_MODEL, OUTPUT_DIM)

    layers = []
    for i in range(NUM_LAYERS):
        lk = jax.random.split(keys[2 + i], 6)
        in_proj_w, _ = dense(lk[0], D_MODEL, 2 * D_INNER)
        cb = 1.0 / math.sqrt(D_CONV)
        conv_w = jax.random.uniform(lk[1], (D_CONV, D_INNER), jnp.float32, -cb, cb)
        conv_b = jax.random.uniform(lk[2], (1, D_INNER), jnp.float32, -cb, cb)
        x_proj_w, _ = dense(lk[3], D_INNER, DT_RANK + 2 * D_STATE)
        # TODO(synk): dt_proj uses plain uniform init (not mamba_ssm's dt_scale /
        # inverse-softplus bias init); init fidelity only, kernel math is exact.
        dt_proj_w, dt_proj_b = dense(lk[4], DT_RANK, D_INNER)
        out_proj_w, _ = dense(lk[5], D_INNER, D_MODEL)
        # A_log init = log(1..d_state)  ->  A = -exp(A_log); stored transposed (N, Din).
        A_t = -jnp.broadcast_to(
            jnp.arange(1, D_STATE + 1, dtype=jnp.float32)[:, None],
            (D_STATE, D_INNER))
        D_skip = jnp.ones((1, D_INNER), jnp.float32)
        layers.append(dict(in_proj_w=in_proj_w, conv_w=conv_w, conv_b=conv_b,
                           x_proj_w=x_proj_w, dt_proj_w=dt_proj_w,
                           dt_proj_b=dt_proj_b, out_proj_w=out_proj_w,
                           A_t=A_t, D=D_skip))
    return dict(emb_w=emb_w, emb_b=emb_b, head_w=head_w, head_b=head_b,
                layers=layers)


if __name__ == "__main__":
    key = jax.random.PRNGKey(0)
    pkey, xkey = jax.random.split(key)
    params = init_params(pkey)
    x = jax.random.normal(xkey, (BATCH, SEQ_LEN, INPUT_DIM), jnp.float32)

    fwd = jax.jit(mamba_model)
    out = jax.block_until_ready(fwd(x, params))

    assert out.shape == (BATCH, OUTPUT_DIM)
    assert bool(jnp.all(jnp.isfinite(out)))
    print("KERNEL_OK")
</pallas_src>

<mosaic_0001>
module attributes {stable_mosaic.version = 11 : i64} {
  func.func @_mamba_model_kernel(%arg0: i32, %arg1: memref<16x4xf32, #tpu.memory_space<vmem>>, %arg2: memref<4x128xf32, #tpu.memory_space<vmem>>, %arg3: memref<8x128xf32, #tpu.memory_space<vmem>>, %arg4: memref<2x4x64xf32, #tpu.memory_space<vmem>>, %arg5: memref<2x64x96xf32, #tpu.memory_space<vmem>>, %arg6: memref<2x16x64xf32, #tpu.memory_space<vmem>>, %arg7: memref<1x64x128xf32, #tpu.memory_space<vmem>>, %arg8: memref<64x6xf32, #tpu.memory_space<vmem>>, %arg9: memref<2x6xf32, #tpu.memory_space<vmem>>) attributes {dimension_semantics = [#tpu.dimension_semantics<arbitrary>], iteration_bounds = array<i64: 1>, scalar_prefetch = 0 : i64, scratch_operands = 0 : i64, tpu.core_type = #tpu.core_type<tc>, window_params = [{pipeline_mode = #tpu.pipeline_mode<synchronous>, transform_indices = @transform_0, window_bounds = array<i64: 16, 4>}, {pipeline_mode = #tpu.pipeline_mode<synchronous>, transform_indices = @transform_1, window_bounds = array<i64: 4, 128>}, {pipeline_mode = #tpu.pipeline_mode<synchronous>, transform_indices = @transform_2, window_bounds = array<i64: 8, 128>}, {pipeline_mode = #tpu.pipeline_mode<synchronous>, transform_indices = @transform_3, window_bounds = array<i64: 2, 4, 64>}, {pipeline_mode = #tpu.pipeline_mode<synchronous>, transform_indices = @transform_4, window_bounds = array<i64: 2, 64, 96>}, {pipeline_mode = #tpu.pipeline_mode<synchronous>, transform_indices = @transform_5, window_bounds = array<i64: 2, 16, 64>}, {pipeline_mode = #tpu.pipeline_mode<synchronous>, transform_indices = @transform_6, window_bounds = array<i64: 1, 64, 128>}, {pipeline_mode = #tpu.pipeline_mode<synchronous>, transform_indices = @transform_7, window_bounds = array<i64: 64, 6>}, {pipeline_mode = #tpu.pipeline_mode<synchronous>, transform_indices = @transform_8, window_bounds = array<i64: 2, 6>}]} {
    %c0 = arith.constant 0 : index
    %c0_0 = arith.constant 0 : index
    %0 = vector.load %arg3[%c0, %c0_0] : memref<8x128xf32, #tpu.memory_space<vmem>>, vector<8x128xf32>
    %c0_1 = arith.constant 0 : index
    %c0_2 = arith.constant 0 : index
    %1 = vector.load %arg1[%c0_1, %c0_2] : memref<16x4xf32, #tpu.memory_space<vmem>>, vector<16x4xf32>
    %c0_3 = arith.constant 0 : index
    %c0_4 = arith.constant 0 : index
    %2 = vector.load %arg2[%c0_3, %c0_4] : memref<4x128xf32, #tpu.memory_space<vmem>>, vector<4x128xf32>
    %cst = arith.constant dense<0.000000e+00> : vector<16x128xf32>
    %3 = tpu.matmul %1, %2, %cst {dimension_numbers = #tpu.dot_dimension_numbers<[1], [0], [0], [1], [0, 0, 1, 1], [], []>} : vector<16x4xf32>, vector<4x128xf32>, vector<16x128xf32> -> vector<16x128xf32>
    %4 = vector.extract_strided_slice %0 {offsets = [0, 0], sizes = [1, 128], strides = [1, 1]} : vector<8x128xf32> to vector<1x128xf32>
    %5 = vector.broadcast %4 : vector<1x128xf32> to vector<16x128xf32>
    %6 = arith.addf %3, %5 : vector<16x128xf32>
    %7 = vector.extract_strided_slice %0 {offsets = [1, 0], sizes = [1, 64], strides = [1, 1]} : vector<8x128xf32> to vector<1x64xf32>
    %8 = vector.extract_strided_slice %0 {offsets = [3, 0], sizes = [1, 64], strides = [1, 1]} : vector<8x128xf32> to vector<1x64xf32>
    %9 = vector.extract_strided_slice %0 {offsets = [5, 0], sizes = [1, 64], strides = [1, 1]} : vector<8x128xf32> to vector<1x64xf32>
    %10 = vector.extract_strided_slice %6 {offsets = [0, 0], sizes = [16, 64], strides = [1, 1]} : vector<16x128xf32> to vector<16x64xf32>
    %11 = vector.extract_strided_slice %6 {offsets = [0, 64], sizes = [16, 64], strides = [1, 1]} : vector<16x128xf32> to vector<16x64xf32>
    %12 = vector.shape_cast %11 : vector<16x64xf32> to vector<2x8x64xf32>
    %13 = vector.shape_cast %10 : vector<16x64xf32> to vector<2x8x64xf32>
    %cst_5 = arith.constant 0.000000e+00 : f32
    %14 = vector.broadcast %cst_5 : f32 to vector<2x3x64xf32>
    %15 = tpu.concatenate %14, %13 in 1 : vector<2x3x64xf32>, vector<2x8x64xf32> -> vector<2x11x64xf32>
    %c0_6 = arith.constant 0 : index
    %c0_7 = arith.constant 0 : index
    %c0_8 = arith.constant 0 : index
    %16 = vector.load %arg4[%c0_6, %c0_7, %c0_8] : memref<2x4x64xf32, #tpu.memory_space<vmem>>, vector<1x4x64xf32>
    %17 = vector.shape_cast %16 : vector<1x4x64xf32> to vector<4x64xf32>
    %18 = vector.extract_strided_slice %17 {offsets = [0, 0], sizes = [1, 64], strides = [1, 1]} : vector<4x64xf32> to vector<1x64xf32>
    %19 = vector.extract_strided_slice %15 {offsets = [0, 0, 0], sizes = [2, 8, 64], strides = [1, 1, 1]} : vector<2x11x64xf32> to vector<2x8x64xf32>
    %20 = vector.shape_cast %18 : vector<1x64xf32> to vector<1x1x64xf32>
    %21 = vector.broadcast %20 : vector<1x1x64xf32> to vector<2x8x64xf32>
    %22 = arith.mulf %21, %19 : vector<2x8x64xf32>
    %23 = vector.shape_cast %7 : vector<1x64xf32> to vector<1x1x64xf32>
    %24 = vector.broadcast %23 : vector<1x1x64xf32> to vector<2x8x64xf32>
    %25 = arith.addf %24, %22 : vector<2x8x64xf32>
    %26 = vector.extract_strided_slice %17 {offsets = [1, 0], sizes = [1, 64], strides = [1, 1]} : vector<4x64xf32> to vector<1x64xf32>
    %27 = vector.extract_strided_slice %15 {offsets = [0, 1, 0], sizes = [2, 8, 64], strides = [1, 1, 1]} : vector<2x11x64xf32> to vector<2x8x64xf32>
    %28 = vector.shape_cast %26 : vector<1x64xf32> to vector<1x1x64xf32>
    %29 = vector.broadcast %28 : vector<1x1x64xf32> to vector<2x8x64xf32>
    %30 = arith.mulf %29, %27 : vector<2x8x64xf32>
    %31 = arith.addf %25, %30 : vector<2x8x64xf32>
    %32 = vector.extract_strided_slice %17 {offsets = [2, 0], sizes = [1, 64], strides = [1, 1]} : vector<4x64xf32> to vector<1x64xf32>
    %33 = vector.extract_strided_slice %15 {offsets = [0, 2, 0], sizes = [2, 8, 64], strides = [1, 1, 1]} : vector<2x11x64xf32> to vector<2x8x64xf32>
    %34 = vector.shape_cast %32 : vector<1x64xf32> to vector<1x1x64xf32>
    %35 = vector.broadcast %34 : vector<1x1x64xf32> to vector<2x8x64xf32>
    %36 = arith.mulf %35, %33 : vector<2x8x64xf32>
    %37 = arith.addf %31, %36 : vector<2x8x64xf32>
    %38 = vector.extract_strided_slice %17 {offsets = [3, 0], sizes = [1, 64], strides = [1, 1]} : vector<4x64xf32> to vector<1x64xf32>
    %39 = vector.extract_strided_slice %15 {offsets = [0, 3, 0], sizes = [2, 8, 64], strides = [1, 1, 1]} : vector<2x11x64xf32> to vector<2x8x64xf32>
    %40 = vector.shape_cast %38 : vector<1x64xf32> to vector<1x1x64xf32>
    %41 = vector.broadcast %40 : vector<1x1x64xf32> to vector<2x8x64xf32>
    %42 = arith.mulf %41, %39 : vector<2x8x64xf32>
    %43 = arith.addf %37, %42 : vector<2x8x64xf32>
    %44 = arith.negf %43 : vector<2x8x64xf32>
    %45 = math.exp %44 : vector<2x8x64xf32>
    %cst_9 = arith.constant 1.000000e+00 : f32
    %46 = vector.broadcast %cst_9 : f32 to vector<2x8x64xf32>
    %47 = arith.addf %46, %45 : vector<2x8x64xf32>
    %48 = arith.divf %46, %47 : vector<2x8x64xf32>
    %49 = arith.mulf %43, %48 : vector<2x8x64xf32>
    %50 = vector.shape_cast %49 : vector<2x8x64xf32> to vector<16x64xf32>
    %c0_10 = arith.constant 0 : index
    %c0_11 = arith.constant 0 : index
    %c0_12 = arith.constant 0 : index
    %51 = vector.load %arg5[%c0_10, %c0_11, %c0_12] : memref<2x64x96xf32, #tpu.memory_space<vmem>>, vector<1x64x96xf32>
    %52 = vector.shape_cast %51 : vector<1x64x96xf32> to vector<64x96xf32>
    %cst_13 = arith.constant dense<0.000000e+00> : vector<16x96xf32>
    %53 = tpu.matmul %50, %52, %cst_13 {dimension_numbers = #tpu.dot_dimension_numbers<[1], [0], [0], [1], [0, 0, 1, 1], [], []>} : vector<16x64xf32>, vector<64x96xf32>, vector<16x96xf32> -> vector<16x96xf32>
    %54 = vector.extract_strided_slice %53 {offsets = [0, 0], sizes = [16, 64], strides = [1, 1]} : vector<16x96xf32> to vector<16x64xf32>
    %55 = vector.broadcast %8 : vector<1x64xf32> to vector<16x64xf32>
    %56 = arith.addf %54, %55 : vector<16x64xf32>
    %cst_14 = arith.constant 0.000000e+00 : f32
    %57 = vector.broadcast %cst_14 : f32 to vector<16x64xf32>
    %58 = arith.maximumf %56, %57 : vector<16x64xf32>
    %59 = vector.broadcast %cst_14 : f32 to vector<16x64xf32>
    %60 = arith.subf %56, %59 : vector<16x64xf32>
    %61 = arith.cmpf one, %60, %60 : vector<16x64xf32>
    %62 = vector.broadcast %cst_14 : f32 to vector<16x64xf32>
    %63 = arith.addf %56, %62 : vector<16x64xf32>
    %64 = math.absf %60 : vector<16x64xf32>
    %cst_15 = arith.constant 0.000000e+00 : f32
    %65 = vector.broadcast %cst_15 : f32 to vector<16x64xf32>
    %66 = arith.subf %65, %64 : vector<16x64xf32>
    %67 = math.exp %66 : vector<16x64xf32>
    %68 = math.log1p %67 : vector<16x64xf32>
    %69 = arith.addf %58, %68 : vector<16x64xf32>
    %70 = arith.select %61, %63, %69 : vector<16x64xi1>, vector<16x64xf32>
    %71 = vector.shape_cast %70 : vector<16x64xf32> to vector<2x8x64xf32>
    %72 = vector.extract_strided_slice %53 {offsets = [0, 64], sizes = [16, 16], strides = [1, 1]} : vector<16x96xf32> to vector<16x16xf32>
    %73 = vector.shape_cast %72 : vector<16x16xf32> to vector<2x8x16xf32>
    %74 = vector.extract_strided_slice %53 {offsets = [0, 80], sizes = [16, 16], strides = [1, 1]} : vector<16x96xf32> to vector<16x16xf32>
    %75 = vector.shape_cast %74 : vector<16x16xf32> to vector<2x8x16xf32>
    %c0_16 = arith.constant 0 : index
    %c0_17 = arith.constant 0 : index
    %c0_18 = arith.constant 0 : index
    %76 = vector.load %arg6[%c0_16, %c0_17, %c0_18] : memref<2x16x64xf32, #tpu.memory_space<vmem>>, vector<1x16x64xf32>
    %77 = vector.shape_cast %76 : vector<1x16x64xf32> to vector<16x64xf32>
    %78 = vector.shape_cast %71 : vector<2x8x64xf32> to vector<2x8x1x64xf32>
    %79 = vector.shape_cast %77 : vector<16x64xf32> to vector<1x1x16x64xf32>
    %80 = vector.broadcast %78 : vector<2x8x1x64xf32> to vector<2x8x16x64xf32>
    %81 = vector.broadcast %79 : vector<1x1x16x64xf32> to vector<2x8x16x64xf32>
    %82 = arith.mulf %80, %81 : vector<2x8x16x64xf32>
    %83 = math.exp %82 : vector<2x8x16x64xf32>
    %84 = vector.shape_cast %73 : vector<2x8x16xf32> to vector<2x8x16x1xf32>
    %85 = arith.mulf %71, %49 : vector<2x8x64xf32>
    %86 = vector.shape_cast %85 : vector<2x8x64xf32> to vector<2x8x1x64xf32>
    %87 = vector.broadcast %84 : vector<2x8x16x1xf32> to vector<2x8x16x64xf32>
    %88 = vector.broadcast %86 : vector<2x8x1x64xf32> to vector<2x8x16x64xf32>
    %89 = arith.mulf %87, %88 : vector<2x8x16x64xf32>
    %90 = vector.shape_cast %75 : vector<2x8x16xf32> to vector<2x8x16x1xf32>
    %cst_19 = arith.constant 0.000000e+00 : f32
    %91 = vector.broadcast %cst_19 : f32 to vector<2x16x64xf32>
    %92 = vector.extract_strided_slice %83 {offsets = [0, 0, 0, 0], sizes = [2, 1, 16, 64], strides = [1, 1, 1, 1]} : vector<2x8x16x64xf32> to vector<2x1x16x64xf32>
    %93 = vector.shape_cast %92 : vector<2x1x16x64xf32> to vector<2x16x64xf32>
    %94 = arith.mulf %93, %91 : vector<2x16x64xf32>
    %95 = vector.extract_strided_slice %89 {offsets = [0, 0, 0, 0], sizes = [2, 1, 16, 64], strides = [1, 1, 1, 1]} : vector<2x8x16x64xf32> to vector<2x1x16x64xf32>
    %96 = vector.shape_cast %95 : vector<2x1x16x64xf32> to vector<2x16x64xf32>
    %97 = arith.addf %94, %96 : vector<2x16x64xf32>
    %98 = vector.extract_strided_slice %90 {offsets = [0, 0, 0, 0], sizes = [2, 1, 16, 1], strides = [1, 1, 1, 1]} : vector<2x8x16x1xf32> to vector<2x1x16x1xf32>
    %99 = vector.shape_cast %98 : vector<2x1x16x1xf32> to vector<2x16x1xf32>
    %100 = vector.broadcast %99 : vector<2x16x1xf32> to vector<2x16x64xf32>
    %101 = arith.mulf %97, %100 : vector<2x16x64xf32>
    %cst_20 = arith.constant dense<0.000000e+00> : vector<2x64xf32>
    %102 = vector.multi_reduction <add>, %101, %cst_20 [1] : vector<2x16x64xf32> to vector<2x64xf32>
    %103 = vector.extract_strided_slice %83 {offsets = [0, 1, 0, 0], sizes = [2, 1, 16, 64], strides = [1, 1, 1, 1]} : vector<2x8x16x64xf32> to vector<2x1x16x64xf32>
    %104 = vector.shape_cast %103 : vector<2x1x16x64xf32> to vector<2x16x64xf32>
    %105 = arith.mulf %104, %97 : vector<2x16x64xf32>
    %106 = vector.extract_strided_slice %89 {offsets = [0, 1, 0, 0], sizes = [2, 1, 16, 64], strides = [1, 1, 1, 1]} : vector<2x8x16x64xf32> to vector<2x1x16x64xf32>
    %107 = vector.shape_cast %106 : vector<2x1x16x64xf32> to vector<2x16x64xf32>
    %108 = arith.addf %105, %107 : vector<2x16x64xf32>
    %109 = vector.extract_strided_slice %90 {offsets = [0, 1, 0, 0], sizes = [2, 1, 16, 1], strides = [1, 1, 1, 1]} : vector<2x8x16x1xf32> to vector<2x1x16x1xf32>
    %110 = vector.shape_cast %109 : vector<2x1x16x1xf32> to vector<2x16x1xf32>
    %111 = vector.broadcast %110 : vector<2x16x1xf32> to vector<2x16x64xf32>
    %112 = arith.mulf %108, %111 : vector<2x16x64xf32>
    %cst_21 = arith.constant dense<0.000000e+00> : vector<2x64xf32>
    %113 = vector.multi_reduction <add>, %112, %cst_21 [1] : vector<2x16x64xf32> to vector<2x64xf32>
    %114 = vector.extract_strided_slice %83 {offsets = [0, 2, 0, 0], sizes = [2, 1, 16, 64], strides = [1, 1, 1, 1]} : vector<2x8x16x64xf32> to vector<2x1x16x64xf32>
    %115 = vector.shape_cast %114 : vector<2x1x16x64xf32> to vector<2x16x64xf32>
    %116 = arith.mulf %115, %108 : vector<2x16x64xf32>
    %117 = vector.extract_strided_slice %89 {offsets = [0, 2, 0, 0], sizes = [2, 1, 16, 64], strides = [1, 1, 1, 1]} : vector<2x8x16x64xf32> to vector<2x1x16x64xf32>
    %118 = vector.shape_cast %117 : vector<2x1x16x64xf32> to vector<2x16x64xf32>
    %119 = arith.addf %116, %118 : vector<2x16x64xf32>
    %120 = vector.extract_strided_slice %90 {offsets = [0, 2, 0, 0], sizes = [2, 1, 16, 1], strides = [1, 1, 1, 1]} : vector<2x8x16x1xf32> to vector<2x1x16x1xf32>
    %121 = vector.shape_cast %120 : vector<2x1x16x1xf32> to vector<2x16x1xf32>
    %122 = vector.broadcast %121 : vector<2x16x1xf32> to vector<2x16x64xf32>
    %123 = arith.mulf %119, %122 : vector<2x16x64xf32>
    %cst_22 = arith.constant dense<0.000000e+00> : vector<2x64xf32>
    %124 = vector.multi_reduction <add>, %123, %cst_22 [1] : vector<2x16x64xf32> to vector<2x64xf32>
    %125 = vector.extract_strided_slice %83 {offsets = [0, 3, 0, 0], sizes = [2, 1, 16, 64], strides = [1, 1, 1, 1]} : vector<2x8x16x64xf32> to vector<2x1x16x64xf32>
    %126 = vector.shape_cast %125 : vector<2x1x16x64xf32> to vector<2x16x64xf32>
    %127 = arith.mulf %126, %119 : vector<2x16x64xf32>
    %128 = vector.extract_strided_slice %89 {offsets = [0, 3, 0, 0], sizes = [2, 1, 16, 64], strides = [1, 1, 1, 1]} : vector<2x8x16x64xf32> to vector<2x1x16x64xf32>
    %129 = vector.shape_cast %128 : vector<2x1x16x64xf32> to vector<2x16x64xf32>
    %130 = arith.addf %127, %129 : vector<2x16x64xf32>
    %131 = vector.extract_strided_slice %90 {offsets = [0, 3, 0, 0], sizes = [2, 1, 16, 1], strides = [1, 1, 1, 1]} : vector<2x8x16x1xf32> to vector<2x1x16x1xf32>
    %132 = vector.shape_cast %131 : vector<2x1x16x1xf32> to vector<2x16x1xf32>
    %133 = vector.broadcast %132 : vector<2x16x1xf32> to vector<2x16x64xf32>
    %134 = arith.mulf %130, %133 : vector<2x16x64xf32>
    %cst_23 = arith.constant dense<0.000000e+00> : vector<2x64xf32>
    %135 = vector.multi_reduction <add>, %134, %cst_23 [1] : vector<2x16x64xf32> to vector<2x64xf32>
    %136 = vector.extract_strided_slice %83 {offsets = [0, 4, 0, 0], sizes = [2, 1, 16, 64], strides = [1, 1, 1, 1]} : vector<2x8x16x64xf32> to vector<2x1x16x64xf32>
    %137 = vector.shape_cast %136 : vector<2x1x16x64xf32> to vector<2x16x64xf32>
    %138 = arith.mulf %137, %130 : vector<2x16x64xf32>
    %139 = vector.extract_strided_slice %89 {offsets = [0, 4, 0, 0], sizes = [2, 1, 16, 64], strides = [1, 1, 1, 1]} : vector<2x8x16x64xf32> to vector<2x1x16x64xf32>
    %140 = vector.shape_cast %139 : vector<2x1x16x64xf32> to vector<2x16x64xf32>
    %141 = arith.addf %138, %140 : vector<2x16x64xf32>
    %142 = vector.extract_strided_slice %90 {offsets = [0, 4, 0, 0], sizes = [2, 1, 16, 1], strides = [1, 1, 1, 1]} : vector<2x8x16x1xf32> to vector<2x1x16x1xf32>
    %143 = vector.shape_cast %142 : vector<2x1x16x1xf32> to vector<2x16x1xf32>
    %144 = vector.broadcast %143 : vector<2x16x1xf32> to vector<2x16x64xf32>
    %145 = arith.mulf %141, %144 : vector<2x16x64xf32>
    %cst_24 = arith.constant dense<0.000000e+00> : vector<2x64xf32>
    %146 = vector.multi_reduction <add>, %145, %cst_24 [1] : vector<2x16x64xf32> to vector<2x64xf32>
    %147 = vector.extract_strided_slice %83 {offsets = [0, 5, 0, 0], sizes = [2, 1, 16, 64], strides = [1, 1, 1, 1]} : vector<2x8x16x64xf32> to vector<2x1x16x64xf32>
    %148 = vector.shape_cast %147 : vector<2x1x16x64xf32> to vector<2x16x64xf32>
    %149 = arith.mulf %148, %141 : vector<2x16x64xf32>
    %150 = vector.extract_strided_slice %89 {offsets = [0, 5, 0, 0], sizes = [2, 1, 16, 64], strides = [1, 1, 1, 1]} : vector<2x8x16x64xf32> to vector<2x1x16x64xf32>
    %151 = vector.shape_cast %150 : vector<2x1x16x64xf32> to vector<2x16x64xf32>
    %152 = arith.addf %149, %151 : vector<2x16x64xf32>
    %153 = vector.extract_strided_slice %90 {offsets = [0, 5, 0, 0], sizes = [2, 1, 16, 1], strides = [1, 1, 1, 1]} : vector<2x8x16x1xf32> to vector<2x1x16x1xf32>
    %154 = vector.shape_cast %153 : vector<2x1x16x1xf32> to vector<2x16x1xf32>
    %155 = vector.broadcast %154 : vector<2x16x1xf32> to vector<2x16x64xf32>
    %156 = arith.mulf %152, %155 : vector<2x16x64xf32>
    %cst_25 = arith.constant dense<0.000000e+00> : vector<2x64xf32>
    %157 = vector.multi_reduction <add>, %156, %cst_25 [1] : vector<2x16x64xf32> to vector<2x64xf32>
    %158 = vector.extract_strided_slice %83 {offsets = [0, 6, 0, 0], sizes = [2, 1, 16, 64], strides = [1, 1, 1, 1]} : vector<2x8x16x64xf32> to vector<2x1x16x64xf32>
    %159 = vector.shape_cast %158 : vector<2x1x16x64xf32> to vector<2x16x64xf32>
    %160 = arith.mulf %159, %152 : vector<2x16x64xf32>
    %161 = vector.extract_strided_slice %89 {offsets = [0, 6, 0, 0], sizes = [2, 1, 16, 64], strides = [1, 1, 1, 1]} : vector<2x8x16x64xf32> to vector<2x1x16x64xf32>
    %162 = vector.shape_cast %161 : vector<2x1x16x64xf32> to vector<2x16x64xf32>
    %163 = arith.addf %160, %162 : vector<2x16x64xf32>
    %164 = vector.extract_strided_slice %90 {offsets = [0, 6, 0, 0], sizes = [2, 1, 16, 1], strides = [1, 1, 1, 1]} : vector<2x8x16x1xf32> to vector<2x1x16x1xf32>
    %165 = vector.shape_cast %164 : vector<2x1x16x1xf32> to vector<2x16x1xf32>
    %166 = vector.broadcast %165 : vector<2x16x1xf32> to vector<2x16x64xf32>
    %167 = arith.mulf %163, %166 : vector<2x16x64xf32>
    %cst_26 = arith.constant dense<0.000000e+00> : vector<2x64xf32>
    %168 = vector.multi_reduction <add>, %167, %cst_26 [1] : vector<2x16x64xf32> to vector<2x64xf32>
    %169 = vector.extract_strided_slice %83 {offsets = [0, 7, 0, 0], sizes = [2, 1, 16, 64], strides = [1, 1, 1, 1]} : vector<2x8x16x64xf32> to vector<2x1x16x64xf32>
    %170 = vector.shape_cast %169 : vector<2x1x16x64xf32> to vector<2x16x64xf32>
    %171 = arith.mulf %170, %163 : vector<2x16x64xf32>
    %172 = vector.extract_strided_slice %89 {offsets = [0, 7, 0, 0], sizes = [2, 1, 16, 64], strides = [1, 1, 1, 1]} : vector<2x8x16x64xf32> to vector<2x1x16x64xf32>
    %173 = vector.shape_cast %172 : vector<2x1x16x64xf32> to vector<2x16x64xf32>
    %174 = arith.addf %171, %173 : vector<2x16x64xf32>
    %175 = vector.extract_strided_slice %90 {offsets = [0, 7, 0, 0], sizes = [2, 1, 16, 1], strides = [1, 1, 1, 1]} : vector<2x8x16x1xf32> to vector<2x1x16x1xf32>
    %176 = vector.shape_cast %175 : vector<2x1x16x1xf32> to vector<2x16x1xf32>
    %177 = vector.broadcast %176 : vector<2x16x1xf32> to vector<2x16x64xf32>
    %178 = arith.mulf %174, %177 : vector<2x16x64xf32>
    %cst_27 = arith.constant dense<0.000000e+00> : vector<2x64xf32>
    %179 = vector.multi_reduction <add>, %178, %cst_27 [1] : vector<2x16x64xf32> to vector<2x64xf32>
    %180 = vector.shape_cast %102 : vector<2x64xf32> to vector<2x1x64xf32>
    %181 = vector.shape_cast %113 : vector<2x64xf32> to vector<2x1x64xf32>
    %182 = vector.shape_cast %124 : vector<2x64xf32> to vector<2x1x64xf32>
    %183 = vector.shape_cast %135 : vector<2x64xf32> to vector<2x1x64xf32>
    %184 = vector.shape_cast %146 : vector<2x64xf32> to vector<2x1x64xf32>
    %185 = vector.shape_cast %157 : vector<2x64xf32> to vector<2x1x64xf32>
    %186 = vector.shape_cast %168 : vector<2x64xf32> to vector<2x1x64xf32>
    %187 = vector.shape_cast %179 : vector<2x64xf32> to vector<2x1x64xf32>
    %188 = tpu.concatenate %180, %181, %182, %183, %184, %185, %186, %187 in 1 : vector<2x1x64xf32>, vector<2x1x64xf32>, vector<2x1x64xf32>, vector<2x1x64xf32>, vector<2x1x64xf32>, vector<2x1x64xf32>, vector<2x1x64xf32>, vector<2x1x64xf32> -> vector<2x8x64xf32>
    %189 = vector.shape_cast %9 : vector<1x64xf32> to vector<1x1x64xf32>
    %190 = vector.broadcast %189 : vector<1x1x64xf32> to vector<2x8x64xf32>
    %191 = arith.mulf %190, %49 : vector<2x8x64xf32>
    %192 = arith.addf %188, %191 : vector<2x8x64xf32>
    %193 = arith.negf %12 : vector<2x8x64xf32>
    %194 = math.exp %193 : vector<2x8x64xf32>
    %cst_28 = arith.constant 1.000000e+00 : f32
    %195 = vector.broadcast %cst_28 : f32 to vector<2x8x64xf32>
    %196 = arith.addf %195, %194 : vector<2x8x64xf32>
    %197 = arith.divf %195, %196 : vector<2x8x64xf32>
    %198 = arith.mulf %12, %197 : vector<2x8x64xf32>
    %199 = arith.mulf %192, %198 : vector<2x8x64xf32>
    %200 = vector.shape_cast %199 : vector<2x8x64xf32> to vector<16x64xf32>
    %c0_29 = arith.constant 0 : index
    %c0_30 = arith.constant 0 : index
    %c0_31 = arith.constant 0 : index
    %201 = vector.load %arg7[%c0_29, %c0_30, %c0_31] : memref<1x64x128xf32, #tpu.memory_space<vmem>>, vector<1x64x128xf32>
    %202 = vector.shape_cast %201 : vector<1x64x128xf32> to vector<64x128xf32>
    %cst_32 = arith.constant dense<0.000000e+00> : vector<16x128xf32>
    %203 = tpu.matmul %200, %202, %cst_32 {dimension_numbers = #tpu.dot_dimension_numbers<[1], [0], [0], [1], [0, 0, 1, 1], [], []>} : vector<16x64xf32>, vector<64x128xf32>, vector<16x128xf32> -> vector<16x128xf32>
    %204 = vector.extract_strided_slice %0 {offsets = [2, 0], sizes = [1, 64], strides = [1, 1]} : vector<8x128xf32> to vector<1x64xf32>
    %205 = vector.extract_strided_slice %0 {offsets = [4, 0], sizes = [1, 64], strides = [1, 1]} : vector<8x128xf32> to vector<1x64xf32>
    %206 = vector.extract_strided_slice %0 {offsets = [6, 0], sizes = [1, 64], strides = [1, 1]} : vector<8x128xf32> to vector<1x64xf32>
    %207 = vector.extract_strided_slice %203 {offsets = [0, 0], sizes = [16, 64], strides = [1, 1]} : vector<16x128xf32> to vector<16x64xf32>
    %208 = vector.extract_strided_slice %203 {offsets = [0, 64], sizes = [16, 64], strides = [1, 1]} : vector<16x128xf32> to vector<16x64xf32>
    %209 = vector.shape_cast %208 : vector<16x64xf32> to vector<2x8x64xf32>
    %210 = vector.shape_cast %207 : vector<16x64xf32> to vector<2x8x64xf32>
    %cst_33 = arith.constant 0.000000e+00 : f32
    %211 = vector.broadcast %cst_33 : f32 to vector<2x3x64xf32>
    %212 = tpu.concatenate %211, %210 in 1 : vector<2x3x64xf32>, vector<2x8x64xf32> -> vector<2x11x64xf32>
    %c1 = arith.constant 1 : index
    %c0_34 = arith.constant 0 : index
    %c0_35 = arith.constant 0 : index
    %213 = vector.load %arg4[%c1, %c0_34, %c0_35] : memref<2x4x64xf32, #tpu.memory_space<vmem>>, vector<1x4x64xf32>
    %214 = vector.shape_cast %213 : vector<1x4x64xf32> to vector<4x64xf32>
    %215 = vector.extract_strided_slice %214 {offsets = [0, 0], sizes = [1, 64], strides = [1, 1]} : vector<4x64xf32> to vector<1x64xf32>
    %216 = vector.extract_strided_slice %212 {offsets = [0, 0, 0], sizes = [2, 8, 64], strides = [1, 1, 1]} : vector<2x11x64xf32> to vector<2x8x64xf32>
    %217 = vector.shape_cast %215 : vector<1x64xf32> to vector<1x1x64xf32>
    %218 = vector.broadcast %217 : vector<1x1x64xf32> to vector<2x8x64xf32>
    %219 = arith.mulf %218, %216 : vector<2x8x64xf32>
    %220 = vector.shape_cast %204 : vector<1x64xf32> to vector<1x1x64xf32>
    %221 = vector.broadcast %220 : vector<1x1x64xf32> to vector<2x8x64xf32>
    %222 = arith.addf %221, %219 : vector<2x8x64xf32>
    %223 = vector.extract_strided_slice %214 {offsets = [1, 0], sizes = [1, 64], strides = [1, 1]} : vector<4x64xf32> to vector<1x64xf32>
    %224 = vector.extract_strided_slice %212 {offsets = [0, 1, 0], sizes = [2, 8, 64], strides = [1, 1, 1]} : vector<2x11x64xf32> to vector<2x8x64xf32>
    %225 = vector.shape_cast %223 : vector<1x64xf32> to vector<1x1x64xf32>
    %226 = vector.broadcast %225 : vector<1x1x64xf32> to vector<2x8x64xf32>
    %227 = arith.mulf %226, %224 : vector<2x8x64xf32>
    %228 = arith.addf %222, %227 : vector<2x8x64xf32>
    %229 = vector.extract_strided_slice %214 {offsets = [2, 0], sizes = [1, 64], strides = [1, 1]} : vector<4x64xf32> to vector<1x64xf32>
    %230 = vector.extract_strided_slice %212 {offsets = [0, 2, 0], sizes = [2, 8, 64], strides = [1, 1, 1]} : vector<2x11x64xf32> to vector<2x8x64xf32>
    %231 = vector.shape_cast %229 : vector<1x64xf32> to vector<1x1x64xf32>
    %232 = vector.broadcast %231 : vector<1x1x64xf32> to vector<2x8x64xf32>
    %233 = arith.mulf %232, %230 : vector<2x8x64xf32>
    %234 = arith.addf %228, %233 : vector<2x8x64xf32>
    %235 = vector.extract_strided_slice %214 {offsets = [3, 0], sizes = [1, 64], strides = [1, 1]} : vector<4x64xf32> to vector<1x64xf32>
    %236 = vector.extract_strided_slice %212 {offsets = [0, 3, 0], sizes = [2, 8, 64], strides = [1, 1, 1]} : vector<2x11x64xf32> to vector<2x8x64xf32>
    %237 = vector.shape_cast %235 : vector<1x64xf32> to vector<1x1x64xf32>
    %238 = vector.broadcast %237 : vector<1x1x64xf32> to vector<2x8x64xf32>
    %239 = arith.mulf %238, %236 : vector<2x8x64xf32>
    %240 = arith.addf %234, %239 : vector<2x8x64xf32>
    %241 = arith.negf %240 : vector<2x8x64xf32>
    %242 = math.exp %241 : vector<2x8x64xf32>
    %cst_36 = arith.constant 1.000000e+00 : f32
    %243 = vector.broadcast %cst_36 : f32 to vector<2x8x64xf32>
    %244 = arith.addf %243, %242 : vector<2x8x64xf32>
    %245 = arith.divf %243, %244 : vector<2x8x64xf32>
    %246 = arith.mulf %240, %245 : vector<2x8x64xf32>
    %247 = vector.shape_cast %246 : vector<2x8x64xf32> to vector<16x64xf32>
    %c1_37 = arith.constant 1 : index
    %c0_38 = arith.constant 0 : index
    %c0_39 = arith.constant 0 : index
    %248 = vector.load %arg5[%c1_37, %c0_38, %c0_39] : memref<2x64x96xf32, #tpu.memory_space<vmem>>, vector<1x64x96xf32>
    %249 = vector.shape_cast %248 : vector<1x64x96xf32> to vector<64x96xf32>
    %cst_40 = arith.constant dense<0.000000e+00> : vector<16x96xf32>
    %250 = tpu.matmul %247, %249, %cst_40 {dimension_numbers = #tpu.dot_dimension_numbers<[1], [0], [0], [1], [0, 0, 1, 1], [], []>} : vector<16x64xf32>, vector<64x96xf32>, vector<16x96xf32> -> vector<16x96xf32>
    %251 = vector.extract_strided_slice %250 {offsets = [0, 0], sizes = [16, 64], strides = [1, 1]} : vector<16x96xf32> to vector<16x64xf32>
    %252 = vector.broadcast %205 : vector<1x64xf32> to vector<16x64xf32>
    %253 = arith.addf %251, %252 : vector<16x64xf32>
    %cst_41 = arith.constant 0.000000e+00 : f32
    %254 = vector.broadcast %cst_41 : f32 to vector<16x64xf32>
    %255 = arith.maximumf %253, %254 : vector<16x64xf32>
    %256 = vector.broadcast %cst_41 : f32 to vector<16x64xf32>
    %257 = arith.subf %253, %256 : vector<16x64xf32>
    %258 = arith.cmpf one, %257, %257 : vector<16x64xf32>
    %259 = vector.broadcast %cst_41 : f32 to vector<16x64xf32>
    %260 = arith.addf %253, %259 : vector<16x64xf32>
    %261 = math.absf %257 : vector<16x64xf32>
    %cst_42 = arith.constant 0.000000e+00 : f32
    %262 = vector.broadcast %cst_42 : f32 to vector<16x64xf32>
    %263 = arith.subf %262, %261 : vector<16x64xf32>
    %264 = math.exp %263 : vector<16x64xf32>
    %265 = math.log1p %264 : vector<16x64xf32>
    %266 = arith.addf %255, %265 : vector<16x64xf32>
    %267 = arith.select %258, %260, %266 : vector<16x64xi1>, vector<16x64xf32>
    %268 = vector.shape_cast %267 : vector<16x64xf32> to vector<2x8x64xf32>
    %269 = vector.extract_strided_slice %250 {offsets = [0, 64], sizes = [16, 16], strides = [1, 1]} : vector<16x96xf32> to vector<16x16xf32>
    %270 = vector.shape_cast %269 : vector<16x16xf32> to vector<2x8x16xf32>
    %271 = vector.extract_strided_slice %250 {offsets = [0, 80], sizes = [16, 16], strides = [1, 1]} : vector<16x96xf32> to vector<16x16xf32>
    %272 = vector.shape_cast %271 : vector<16x16xf32> to vector<2x8x16xf32>
    %c1_43 = arith.constant 1 : index
    %c0_44 = arith.constant 0 : index
    %c0_45 = arith.constant 0 : index
    %273 = vector.load %arg6[%c1_43, %c0_44, %c0_45] : memref<2x16x64xf32, #tpu.memory_space<vmem>>, vector<1x16x64xf32>
    %274 = vector.shape_cast %273 : vector<1x16x64xf32> to vector<16x64xf32>
    %275 = vector.shape_cast %268 : vector<2x8x64xf32> to vector<2x8x1x64xf32>
    %276 = vector.shape_cast %274 : vector<16x64xf32> to vector<1x1x16x64xf32>
    %277 = vector.broadcast %275 : vector<2x8x1x64xf32> to vector<2x8x16x64xf32>
    %278 = vector.broadcast %276 : vector<1x1x16x64xf32> to vector<2x8x16x64xf32>
    %279 = arith.mulf %277, %278 : vector<2x8x16x64xf32>
    %280 = math.exp %279 : vector<2x8x16x64xf32>
    %281 = vector.shape_cast %270 : vector<2x8x16xf32> to vector<2x8x16x1xf32>
    %282 = arith.mulf %268, %246 : vector<2x8x64xf32>
    %283 = vector.shape_cast %282 : vector<2x8x64xf32> to vector<2x8x1x64xf32>
    %284 = vector.broadcast %281 : vector<2x8x16x1xf32> to vector<2x8x16x64xf32>
    %285 = vector.broadcast %283 : vector<2x8x1x64xf32> to vector<2x8x16x64xf32>
    %286 = arith.mulf %284, %285 : vector<2x8x16x64xf32>
    %287 = vector.shape_cast %272 : vector<2x8x16xf32> to vector<2x8x16x1xf32>
    %cst_46 = arith.constant 0.000000e+00 : f32
    %288 = vector.broadcast %cst_46 : f32 to vector<2x16x64xf32>
    %289 = vector.extract_strided_slice %280 {offsets = [0, 0, 0, 0], sizes = [2, 1, 16, 64], strides = [1, 1, 1, 1]} : vector<2x8x16x64xf32> to vector<2x1x16x64xf32>
    %290 = vector.shape_cast %289 : vector<2x1x16x64xf32> to vector<2x16x64xf32>
    %291 = arith.mulf %290, %288 : vector<2x16x64xf32>
    %292 = vector.extract_strided_slice %286 {offsets = [0, 0, 0, 0], sizes = [2, 1, 16, 64], strides = [1, 1, 1, 1]} : vector<2x8x16x64xf32> to vector<2x1x16x64xf32>
    %293 = vector.shape_cast %292 : vector<2x1x16x64xf32> to vector<2x16x64xf32>
    %294 = arith.addf %291, %293 : vector<2x16x64xf32>
    %295 = vector.extract_strided_slice %280 {offsets = [0, 1, 0, 0], sizes = [2, 1, 16, 64], strides = [1, 1, 1, 1]} : vector<2x8x16x64xf32> to vector<2x1x16x64xf32>
    %296 = vector.shape_cast %295 : vector<2x1x16x64xf32> to vector<2x16x64xf32>
    %297 = arith.mulf %296, %294 : vector<2x16x64xf32>
    %298 = vector.extract_strided_slice %286 {offsets = [0, 1, 0, 0], sizes = [2, 1, 16, 64], strides = [1, 1, 1, 1]} : vector<2x8x16x64xf32> to vector<2x1x16x64xf32>
    %299 = vector.shape_cast %298 : vector<2x1x16x64xf32> to vector<2x16x64xf32>
    %300 = arith.addf %297, %299 : vector<2x16x64xf32>
    %301 = vector.extract_strided_slice %280 {offsets = [0, 2, 0, 0], sizes = [2, 1, 16, 64], strides = [1, 1, 1, 1]} : vector<2x8x16x64xf32> to vector<2x1x16x64xf32>
    %302 = vector.shape_cast %301 : vector<2x1x16x64xf32> to vector<2x16x64xf32>
    %303 = arith.mulf %302, %300 : vector<2x16x64xf32>
    %304 = vector.extract_strided_slice %286 {offsets = [0, 2, 0, 0], sizes = [2, 1, 16, 64], strides = [1, 1, 1, 1]} : vector<2x8x16x64xf32> to vector<2x1x16x64xf32>
    %305 = vector.shape_cast %304 : vector<2x1x16x64xf32> to vector<2x16x64xf32>
    %306 = arith.addf %303, %305 : vector<2x16x64xf32>
    %307 = vector.extract_strided_slice %280 {offsets = [0, 3, 0, 0], sizes = [2, 1, 16, 64], strides = [1, 1, 1, 1]} : vector<2x8x16x64xf32> to vector<2x1x16x64xf32>
    %308 = vector.shape_cast %307 : vector<2x1x16x64xf32> to vector<2x16x64xf32>
    %309 = arith.mulf %308, %306 : vector<2x16x64xf32>
    %310 = vector.extract_strided_slice %286 {offsets = [0, 3, 0, 0], sizes = [2, 1, 16, 64], strides = [1, 1, 1, 1]} : vector<2x8x16x64xf32> to vector<2x1x16x64xf32>
    %311 = vector.shape_cast %310 : vector<2x1x16x64xf32> to vector<2x16x64xf32>
    %312 = arith.addf %309, %311 : vector<2x16x64xf32>
    %313 = vector.extract_strided_slice %280 {offsets = [0, 4, 0, 0], sizes = [2, 1, 16, 64], strides = [1, 1, 1, 1]} : vector<2x8x16x64xf32> to vector<2x1x16x64xf32>
    %314 = vector.shape_cast %313 : vector<2x1x16x64xf32> to vector<2x16x64xf32>
    %315 = arith.mulf %314, %312 : vector<2x16x64xf32>
    %316 = vector.extract_strided_slice %286 {offsets = [0, 4, 0, 0], sizes = [2, 1, 16, 64], strides = [1, 1, 1, 1]} : vector<2x8x16x64xf32> to vector<2x1x16x64xf32>
    %317 = vector.shape_cast %316 : vector<2x1x16x64xf32> to vector<2x16x64xf32>
    %318 = arith.addf %315, %317 : vector<2x16x64xf32>
    %319 = vector.extract_strided_slice %280 {offsets = [0, 5, 0, 0], sizes = [2, 1, 16, 64], strides = [1, 1, 1, 1]} : vector<2x8x16x64xf32> to vector<2x1x16x64xf32>
    %320 = vector.shape_cast %319 : vector<2x1x16x64xf32> to vector<2x16x64xf32>
    %321 = arith.mulf %320, %318 : vector<2x16x64xf32>
    %322 = vector.extract_strided_slice %286 {offsets = [0, 5, 0, 0], sizes = [2, 1, 16, 64], strides = [1, 1, 1, 1]} : vector<2x8x16x64xf32> to vector<2x1x16x64xf32>
    %323 = vector.shape_cast %322 : vector<2x1x16x64xf32> to vector<2x16x64xf32>
    %324 = arith.addf %321, %323 : vector<2x16x64xf32>
    %325 = vector.extract_strided_slice %280 {offsets = [0, 6, 0, 0], sizes = [2, 1, 16, 64], strides = [1, 1, 1, 1]} : vector<2x8x16x64xf32> to vector<2x1x16x64xf32>
    %326 = vector.shape_cast %325 : vector<2x1x16x64xf32> to vector<2x16x64xf32>
    %327 = arith.mulf %326, %324 : vector<2x16x64xf32>
    %328 = vector.extract_strided_slice %286 {offsets = [0, 6, 0, 0], sizes = [2, 1, 16, 64], strides = [1, 1, 1, 1]} : vector<2x8x16x64xf32> to vector<2x1x16x64xf32>
    %329 = vector.shape_cast %328 : vector<2x1x16x64xf32> to vector<2x16x64xf32>
    %330 = arith.addf %327, %329 : vector<2x16x64xf32>
    %331 = vector.extract_strided_slice %280 {offsets = [0, 7, 0, 0], sizes = [2, 1, 16, 64], strides = [1, 1, 1, 1]} : vector<2x8x16x64xf32> to vector<2x1x16x64xf32>
    %332 = vector.shape_cast %331 : vector<2x1x16x64xf32> to vector<2x16x64xf32>
    %333 = arith.mulf %332, %330 : vector<2x16x64xf32>
    %334 = vector.extract_strided_slice %286 {offsets = [0, 7, 0, 0], sizes = [2, 1, 16, 64], strides = [1, 1, 1, 1]} : vector<2x8x16x64xf32> to vector<2x1x16x64xf32>
    %335 = vector.shape_cast %334 : vector<2x1x16x64xf32> to vector<2x16x64xf32>
    %336 = arith.addf %333, %335 : vector<2x16x64xf32>
    %337 = vector.extract_strided_slice %287 {offsets = [0, 7, 0, 0], sizes = [2, 1, 16, 1], strides = [1, 1, 1, 1]} : vector<2x8x16x1xf32> to vector<2x1x16x1xf32>
    %338 = vector.shape_cast %337 : vector<2x1x16x1xf32> to vector<2x16x1xf32>
    %339 = vector.broadcast %338 : vector<2x16x1xf32> to vector<2x16x64xf32>
    %340 = arith.mulf %336, %339 : vector<2x16x64xf32>
    %cst_47 = arith.constant dense<0.000000e+00> : vector<2x64xf32>
    %341 = vector.multi_reduction <add>, %340, %cst_47 [1] : vector<2x16x64xf32> to vector<2x64xf32>
    %342 = vector.extract_strided_slice %246 {offsets = [0, 7, 0], sizes = [2, 1, 64], strides = [1, 1, 1]} : vector<2x8x64xf32> to vector<2x1x64xf32>
    %343 = vector.shape_cast %342 : vector<2x1x64xf32> to vector<2x64xf32>
    %344 = vector.extract_strided_slice %209 {offsets = [0, 7, 0], sizes = [2, 1, 64], strides = [1, 1, 1]} : vector<2x8x64xf32> to vector<2x1x64xf32>
    %345 = vector.shape_cast %344 : vector<2x1x64xf32> to vector<2x64xf32>
    %346 = vector.broadcast %206 : vector<1x64xf32> to vector<2x64xf32>
    %347 = arith.mulf %346, %343 : vector<2x64xf32>
    %348 = arith.addf %341, %347 : vector<2x64xf32>
    %349 = arith.negf %345 : vector<2x64xf32>
    %350 = math.exp %349 : vector<2x64xf32>
    %cst_48 = arith.constant 1.000000e+00 : f32
    %351 = vector.broadcast %cst_48 : f32 to vector<2x64xf32>
    %352 = arith.addf %351, %350 : vector<2x64xf32>
    %353 = arith.divf %351, %352 : vector<2x64xf32>
    %354 = arith.mulf %345, %353 : vector<2x64xf32>
    %355 = arith.mulf %348, %354 : vector<2x64xf32>
    %356 = vector.extract_strided_slice %0 {offsets = [7, 0], sizes = [1, 6], strides = [1, 1]} : vector<8x128xf32> to vector<1x6xf32>
    %c0_49 = arith.constant 0 : index
    %c0_50 = arith.constant 0 : index
    %357 = vector.load %arg8[%c0_49, %c0_50] : memref<64x6xf32, #tpu.memory_space<vmem>>, vector<64x6xf32>
    %cst_51 = arith.constant dense<0.000000e+00> : vector<2x6xf32>
    %358 = tpu.matmul %355, %357, %cst_51 {dimension_numbers = #tpu.dot_dimension_numbers<[1], [0], [0], [1], [0, 0, 1, 1], [], []>} : vector<2x64xf32>, vector<64x6xf32>, vector<2x6xf32> -> vector<2x6xf32>
    %359 = vector.broadcast %356 : vector<1x6xf32> to vector<2x6xf32>
    %360 = arith.addf %358, %359 : vector<2x6xf32>
    %c0_52 = arith.constant 0 : index
    %c0_53 = arith.constant 0 : index
    %361 = vector.load %arg9[%c0_52, %c0_53] : memref<2x6xf32, #tpu.memory_space<vmem>>, vector<2x6xf32>
    tpu.vector_store %arg9[%c0_52, %c0_53], %360 {strides = array<i32>} : memref<2x6xf32, #tpu.memory_space<vmem>>, vector<2x6xf32>,
    return
  }
  func.func @transform_0(%arg0: i32) -> (i32, i32) {
    %c0_i32 = arith.constant 0 : i32
    %c0_i32_0 = arith.constant 0 : i32
    %c0_i32_1 = arith.constant 0 : i32
    return %c0_i32, %c0_i32_0 : i32, i32
  }
  func.func @transform_1(%arg0: i32) -> (i32, i32) {
    %c0_i32 = arith.constant 0 : i32
    %c0_i32_0 = arith.constant 0 : i32
    %c0_i32_1 = arith.constant 0 : i32
    return %c0_i32, %c0_i32_0 : i32, i32
  }
  func.func @transform_2(%arg0: i32) -> (i32, i32) {
    %c0_i32 = arith.constant 0 : i32
    %c0_i32_0 = arith.constant 0 : i32
    %c0_i32_1 = arith.constant 0 : i32
    return %c0_i32, %c0_i32_0 : i32, i32
  }
  func.func @transform_3(%arg0: i32) -> (i32, i32, i32) {
    %c0_i32 = arith.constant 0 : i32
    %c0_i32_0 = arith.constant 0 : i32
    %c0_i32_1 = arith.constant 0 : i32
    %c0_i32_2 = arith.constant 0 : i32
    return %c0_i32, %c0_i32_0, %c0_i32_1 : i32, i32, i32
  }
  func.func @transform_4(%arg0: i32) -> (i32, i32, i32) {
    %c0_i32 = arith.constant 0 : i32
    %c0_i32_0 = arith.constant 0 : i32
    %c0_i32_1 = arith.constant 0 : i32
    %c0_i32_2 = arith.constant 0 : i32
    return %c0_i32, %c0_i32_0, %c0_i32_1 : i32, i32, i32
  }
  func.func @transform_5(%arg0: i32) -> (i32, i32, i32) {
    %c0_i32 = arith.constant 0 : i32
    %c0_i32_0 = arith.constant 0 : i32
    %c0_i32_1 = arith.constant 0 : i32
    %c0_i32_2 = arith.constant 0 : i32
    return %c0_i32, %c0_i32_0, %c0_i32_1 : i32, i32, i32
  }
  func.func @transform_6(%arg0: i32) -> (i32, i32, i32) {
    %c0_i32 = arith.constant 0 : i32
    %c0_i32_0 = arith.constant 0 : i32
    %c0_i32_1 = arith.constant 0 : i32
    %c0_i32_2 = arith.constant 0 : i32
    return %c0_i32, %c0_i32_0, %c0_i32_1 : i32, i32, i32
  }
  func.func @transform_7(%arg0: i32) -> (i32, i32) {
    %c0_i32 = arith.constant 0 : i32
    %c0_i32_0 = arith.constant 0 : i32
    %c0_i32_1 = arith.constant 0 : i32
    return %c0_i32, %c0_i32_0 : i32, i32
  }
  func.func @transform_8(%arg0: i32) -> (i32, i32) {
    %c0_i32 = arith.constant 0 : i32
    %c0_i32_0 = arith.constant 0 : i32
    %c0_i32_1 = arith.constant 0 : i32
    return %c0_i32, %c0_i32_0 : i32, i32
  }
}

</mosaic_0001>

<llo_original>
// kernel: mamba_model.1
$region0: #{mamba_model.1}
  #allocation0 [shape = 'u32[]', space=smem, size = 0x4, offset = 0x4, fixed_abs, tag = 'smem constant byte address 0x4 - core index']
  #allocation1 [shape = 'u32[144,128]{1,0:T(1,128)}', space=vmem, size = 0x12000, scoped, tag = 'internal scratch']
  %s0 = inlined_call_operand.vmem [shape: f32[16,4], index: 0, kind: input, shape index: {}]
  %s1 = inlined_call_operand.vmem [shape: f32[4,128], index: 1, kind: input, shape index: {}]
  %s2 = inlined_call_operand.vmem [shape: f32[8,128], index: 2, kind: input, shape index: {}]
  %s3 = inlined_call_operand.vmem [shape: f32[2,4,64], index: 3, kind: input, shape index: {}]
  %s4 = inlined_call_operand.vmem [shape: f32[2,64,96], index: 4, kind: input, shape index: {}]
  %s5 = inlined_call_operand.vmem [shape: f32[2,16,64], index: 5, kind: input, shape index: {}]
  %s6 = inlined_call_operand.vmem [shape: f32[1,64,128], index: 6, kind: input, shape index: {}]
  %s7 = inlined_call_operand.vmem [shape: f32[64,6], index: 7, kind: input, shape index: {}]
  %s8 = inlined_call_operand.hbm [shape: f32[2,6], index: 8, kind: output, shape index: {}]
  %s9 = sld [smem:[#allocation0]]
  $region42: #{mamba_model.1} parent=0
    _
  %s11 = ssub.s32 1, %s9
  %s12 = scalar_select 0, %s11, %s9
  $region1: #{mamba_model.1} parent=0
    #allocation2 [shape = 'u8[1024]{0}', space=vmem, size = 0x400, scoped, tag = 'output window, operand 0, single buffered']
    #allocation3 [shape = 's32[1]{0}', space=sflag, size = 0x4, scoped, tag = 'scoped memory for mamba_model.1']
    %13 = vsyncpa [#allocation3], 0
    // Predicated region
    $region2: #{mamba_model.1} parent=1 // pred_check
      _
    $region3: #{mamba_model.1} parent=1 // pred_check_branch
      %15 = sbr.rel (0) target = $region5
    $region4: #{mamba_model.1} parent=1 // pred_region
      _
    $region5: #{mamba_model.1} parent=1 // pred_fallthru
      _
    // Predicated region
    $region6: #{mamba_model.1} parent=1 // pred_check
      _
    $region7: #{mamba_model.1} parent=1 // pred_check_branch
      %17 = sbr.rel (0) target = $region9
    $region8: #{mamba_model.1} parent=1 // pred_region
      _
    $region9: #{mamba_model.1} parent=1 // pred_fallthru
      _
    // Predicated region
    $region10: #{mamba_model.1} parent=1 // pred_check
      _
    $region11: #{mamba_model.1} parent=1 // pred_check_branch
      %19 = sbr.rel (0) target = $region13
    $region12: #{mamba_model.1} parent=1 // pred_region
      _
    $region13: #{mamba_model.1} parent=1 // pred_fallthru
      _
    // Predicated region
    $region14: #{mamba_model.1} parent=1 // pred_check
      _
    $region15: #{mamba_model.1} parent=1 // pred_check_branch
      %21 = sbr.rel (0) target = $region17
    $region16: #{mamba_model.1} parent=1 // pred_region
      _
    $region17: #{mamba_model.1} parent=1 // pred_fallthru
      _
    // Predicated region
    $region18: #{mamba_model.1} parent=1 // pred_check
      _
    $region19: #{mamba_model.1} parent=1 // pred_check_branch
      %23 = sbr.rel (0) target = $region21
    $region20: #{mamba_model.1} parent=1 // pred_region
      _
    $region21: #{mamba_model.1} parent=1 // pred_fallthru
      _
    // Predicated region
    $region22: #{mamba_model.1} parent=1 // pred_check
      _
    $region23: #{mamba_model.1} parent=1 // pred_check_branch
      %25 = sbr.rel (0) target = $region25
    $region24: #{mamba_model.1} parent=1 // pred_region
      _
    $region25: #{mamba_model.1} parent=1 // pred_fallthru
      _
    // Predicated region
    $region26: #{mamba_model.1} parent=1 // pred_check
      _
    $region27: #{mamba_model.1} parent=1 // pred_check_branch
      %27 = sbr.rel (0) target = $region29
    $region28: #{mamba_model.1} parent=1 // pred_region
      _
    $region29: #{mamba_model.1} parent=1 // pred_fallthru
      _
    // Predicated region
    $region30: #{mamba_model.1} parent=1 // pred_check
      _
    $region31: #{mamba_model.1} parent=1 // pred_check_branch
      %29 = sbr.rel (0) target = $region33
    $region32: #{mamba_model.1} parent=1 // pred_region
      _
    $region33: #{mamba_model.1} parent=1 // pred_fallthru
      _
    %v30 = vld [vmem:[%s2] sm:$0xff]
    %v31 = vld [vmem:[%s0] sm:$0xff]
    %v32 = vld [vmem:[%s0 + $0x8] sm:$0xff]
    %v33 = vld [vmem:[%s1] sm:$0xf]
    %v34 = vlaneseq
    %v35 = vshrl.u32 %v34, 7
    %v36 = vsub.s32 0, %v35
    %v37 = vrot.slane %v30, %v36
    %vm38 = vcmask 31744
    %v40 = vsel %vm38, %v31, 0
    %v43 = vsel %vm38, %v32, 0
    %vm45 = vcmask 1043456
    %v47 = vsel %vm45, %v33, 0
    %49 = vmatprep.subr.mxu0 0.0
    %50 = vmatpush1.msra.mxu0 0.0
    %51 = vmatprep.subr.mxu0 0.0
    %52 = vmatpush1.msra.mxu0 0.0
    %53 = vmatprep.subr.mxu0 0.0
    %54 = vmatpush1.msra.mxu0 0.0
    %55 = vmatprep.subr.mxu0 0.0
    %56 = vmatpush1.msra.mxu0 0.0
    %57 = vmatprep.subr.mxu0 0.0
    %58 = vmatpush1.msra.mxu0 0.0
    %59 = vmatprep.subr.mxu0 0.0
    %60 = vmatpush1.msra.mxu0 0.0
    %61 = vmatprep.subr.mxu0 0.0
    %62 = vmatpush1.msra.mxu0 0.0
    %63 = vmatprep.subr.mxu0 0.0
    %64 = vmatpush1.msra.mxu0 0.0
    %65 = vmatprep.subr.mxu0 0.0
    %66 = vmatpush1.msra.mxu0 0.0
    %67 = vmatprep.subr.mxu0 0.0
    %68 = vmatpush1.msra.mxu0 0.0
    %69 = vmatprep.subr.mxu0 0.0
    %70 = vmatpush1.msra.mxu0 0.0
    %71 = vmatprep.subr.mxu0 0.0
    %72 = vmatpush1.msra.mxu0 0.0
    %73 = vmatprep.subr.mxu0 0.0
    %74 = vmatpush1.msra.mxu0 0.0
    %75 = vmatprep.subr.mxu0 0.0
    %76 = vmatpush1.msra.mxu0 0.0
    %77 = vmatprep.subr.mxu0 0.0
    %78 = vmatpush1.msra.mxu0 0.0
    %79 = vmatprep.subr.mxu0 0.0
    %80 = vmatpush1.msra.mxu0 %v47
    %81 = vmatprep.subr.mxu0 0.0
    %82 = vmatpush2.msra.mxu0 0.0
    %83 = vmatprep.subr.mxu0 0.0
    %84 = vmatpush2.msra.mxu0 0.0
    %85 = vmatprep.subr.mxu0 0.0
    %86 = vmatpush2.msra.mxu0 0.0
    %87 = vmatprep.subr.mxu0 0.0
    %88 = vmatpush2.msra.mxu0 0.0
    %89 = vmatprep.subr.mxu0 0.0
    %90 = vmatpush2.msra.mxu0 0.0
    %91 = vmatprep.subr.mxu0 0.0
    %92 = vmatpush2.msra.mxu0 0.0
    %93 = vmatprep.subr.mxu0 0.0
    %94 = vmatpush2.msra.mxu0 0.0
    %95 = vmatprep.subr.mxu0 0.0
    %96 = vmatpush2.msra.mxu0 0.0
    %97 = vmatprep.subr.mxu0 0.0
    %98 = vmatpush2.msra.mxu0 0.0
    %99 = vmatprep.subr.mxu0 0.0
    %100 = vmatpush2.msra.mxu0 0.0
    %101 = vmatprep.subr.mxu0 0.0
    %102 = vmatpush2.msra.mxu0 0.0
    %103 = vmatprep.subr.mxu0 0.0
    %104 = vmatpush2.msra.mxu0 0.0
    %105 = vmatprep.subr.mxu0 0.0
    %106 = vmatpush2.msra.mxu0 0.0
    %107 = vmatprep.subr.mxu0 0.0
    %108 = vmatpush2.msra.mxu0 0.0
    %109 = vmatprep.subr.mxu0 0.0
    %110 = vmatpush2.msra.mxu0 0.0
    %111 = vmatprep.subr.mxu0 0.0
    %112 = vmatpush2.msra.mxu0 0.0
    %113 = vmatprep.mubr.f32.mxu0 0.0
    %114 = vmatmul.mubr.f32.gmra.mxu0 %v40
    %v115 = vpop.f32.mrf.mxu0
    %v116 = vadd.f32 %v37, %v115
    %v117 = vpop.f32.mrf.mxu0
    %118 = vmatprep.mubr.f32.mxu0 0.0
    %119 = vmatmul.mubr.f32.gmra.mxu0 %v43
    %v120 = vpop.f32.mrf.mxu0
    %v121 = vadd.f32 %v37, %v120
    %v122 = vpop.f32.mrf.mxu0
    %123 = vdwg.mxu0
    %v126 = vrot.slane %v116, 5
    %v127 = vrot.slane %v121, 5
    %vm130 = vcmask 1042432
    %v131 = vsel %vm130, 0.0, %v126
    %v132 = vsel %vm130, 0.0, %v127
    %v133 = vld [vmem:[%s3] sm:$0xf]
    %v134 = vlaneseq
    %v135 = vshrl.u32 %v134, 7
    %v136 = vsub.s32 0, %v135
    %v137 = vrot.slane %v133, %v136
    %v138 = vmul.f32 %v137, %v131
    %v139 = vmul.f32 %v137, %v132
    %v140 = vlaneseq
    %v141 = vshrl.u32 %v140, 7
    %v142 = vsub.s32 1, %v141
    %v143 = vrot.slane %v30, %v142
    %v144 = vadd.f32 %v143, %v138
    %v145 = vadd.f32 %v143, %v139
    %v146 = vlaneseq
    %v147 = vshrl.u32 %v146, 7
    %v148 = vsub.s32 1, %v147
    %v149 = vrot.slane %v133, %v148
    %v150 = vmul.f32 %v149, %v131
    %v151 = vmul.f32 %v149, %v126
    %v152 = vmul.f32 %v149, %v132
    %v153 = vmul.f32 %v149, %v127
    %vm158 = vcmask 1046528
    %v159 = vrot.slane %v150, 1
    %v160 = vrot.slane %v151, 1
    %v161 = vsel %vm158, %v159, %v160
    %v162 = vrot.slane %v152, 1
    %v163 = vrot.slane %v153, 1
    %v164 = vsel %vm158, %v162, %v163
    %v167 = vadd.f32 %v144, %v161
    %v168 = vadd.f32 %v145, %v164
    %v169 = vlaneseq
    %v170 = vshrl.u32 %v169, 7
    %v171 = vsub.s32 2, %v170
    %v172 = vrot.slane %v133, %v171
    %v173 = vmul.f32 %v172, %v131
    %v174 = vmul.f32 %v172, %v126
    %v175 = vmul.f32 %v172, %v132
    %v176 = vmul.f32 %v172, %v127
    %vm181 = vcmask 1045504
    %v182 = vrot.slane %v173, 2
    %v183 = vrot.slane %v174, 2
    %v184 = vsel %vm181, %v182, %v183
    %v185 = vrot.slane %v175, 2
    %v186 = vrot.slane %v176, 2
    %v187 = vsel %vm181, %v185, %v186
    %v190 = vadd.f32 %v167, %v184
    %v191 = vadd.f32 %v168, %v187
    %v192 = vlaneseq
    %v193 = vshrl.u32 %v192, 7
    %v194 = vsub.s32 3, %v193
    %v195 = vrot.slane %v133, %v194
    %v196 = vmul.f32 %v195, %v131
    %v197 = vmul.f32 %v195, %v126
    %v198 = vmul.f32 %v195, %v132
    %v199 = vmul.f32 %v195, %v127
    %vm204 = vcmask 1044480
    %v205 = vrot.slane %v196, 3
    %v206 = vrot.slane %v197, 3
    %v207 = vsel %vm204, %v205, %v206
    %v208 = vrot.slane %v198, 3
    %v209 = vrot.slane %v199, 3
    %v210 = vsel %vm204, %v208, %v209
    %v213 = vadd.f32 %v190, %v207
    %v214 = vadd.f32 %v191, %v210
    %v215 = vxor.u32 %v213, 2147483648
    %v216 = vxor.u32 %v214, 2147483648
    %v217 = vmul.f32 %v215, 1.442695
    %v218 = vpow.pop %v217
    %v219 = vmul.f32 %v216, 1.442695
    %v220 = vpow.pop %v219
    %v221 = vadd.f32 %v218, 1.0
    %v222 = vadd.f32 %v220, 1.0
    %v223 = vrcp.pop %v221
    %v224 = vmul.f32 1.0, %v223
    %v225 = vrcp.pop %v222
    %v226 = vmul.f32 1.0, %v225
    %v227 = vmul.f32 %v213, %v224
    %v228 = vmul.f32 %v214, %v226
    %v229 = vld [vmem:[%s4] sm:$0xff]
    %v230 = vld [vmem:[%s4 + $0x8] sm:$0xff]
    %v231 = vld [vmem:[%s4 + $0x10] sm:$0xff]
    %v232 = vld [vmem:[%s4 + $0x18] sm:$0xff]
    %v233 = vld [vmem:[%s4 + $0x20] sm:$0xff]
    %v234 = vld [vmem:[%s4 + $0x28] sm:$0xff]
    %v235 = vld [vmem:[%s4 + $0x30] sm:$0xff]
    %v236 = vld [vmem:[%s4 + $0x38] sm:$0xff]
    %vm237 = vcmask 523264
    %v239 = vsel %vm237, %v227, 0
    %v242 = vsel %vm237, %v228, 0
    %244 = vmatprep.subr.mxu0 0.0
    %245 = vmatpush1.msra.mxu0 0.0
    %246 = vmatprep.subr.mxu0 0.0
    %247 = vmatpush1.msra.mxu0 0.0
    %248 = vmatprep.subr.mxu0 0.0
    %249 = vmatpush1.msra.mxu0 0.0
    %250 = vmatprep.subr.mxu0 0.0
    %251 = vmatpush1.msra.mxu0 0.0
    %252 = vmatprep.subr.mxu0 0.0
    %253 = vmatpush1.msra.mxu0 0.0
    %254 = vmatprep.subr.mxu0 0.0
    %255 = vmatpush1.msra.mxu0 0.0
    %256 = vmatprep.subr.mxu0 0.0
    %257 = vmatpush1.msra.mxu0 0.0
    %258 = vmatprep.subr.mxu0 0.0
    %259 = vmatpush1.msra.mxu0 0.0
    %260 = vmatprep.subr.mxu0 0.0
    %261 = vmatpush1.msra.mxu0 %v236
    %262 = vmatprep.subr.mxu0 0.0
    %263 = vmatpush1.msra.mxu0 %v235
    %264 = vmatprep.subr.mxu0 0.0
    %265 = vmatpush1.msra.mxu0 %v234
    %266 = vmatprep.subr.mxu0 0.0
    %267 = vmatpush1.msra.mxu0 %v233
    %268 = vmatprep.subr.mxu0 0.0
    %269 = vmatpush1.msra.mxu0 %v232
    %270 = vmatprep.subr.mxu0 0.0
    %271 = vmatpush1.msra.mxu0 %v231
    %272 = vmatprep.subr.mxu0 0.0
    %273 = vmatpush1.msra.mxu0 %v230
    %274 = vmatprep.subr.mxu0 0.0
    %275 = vmatpush1.msra.mxu0 %v229
    %276 = vmatprep.subr.mxu0 0.0
    %277 = vmatpush2.msra.mxu0 0.0
    %278 = vmatprep.subr.mxu0 0.0
    %279 = vmatpush2.msra.mxu0 0.0
    %280 = vmatprep.subr.mxu0 0.0
    %281 = vmatpush2.msra.mxu0 0.0
    %282 = vmatprep.subr.mxu0 0.0
    %283 = vmatpush2.msra.mxu0 0.0
    %284 = vmatprep.subr.mxu0 0.0
    %285 = vmatpush2.msra.mxu0 0.0
    %286 = vmatprep.subr.mxu0 0.0
    %287 = vmatpush2.msra.mxu0 0.0
    %288 = vmatprep.subr.mxu0 0.0
    %289 = vmatpush2.msra.mxu0 0.0
    %290 = vmatprep.subr.mxu0 0.0
    %291 = vmatpush2.msra.mxu0 0.0
    %292 = vmatprep.subr.mxu0 0.0
    %293 = vmatpush2.msra.mxu0 0.0
    %294 = vmatprep.subr.mxu0 0.0
    %295 = vmatpush2.msra.mxu0 0.0
    %296 = vmatprep.subr.mxu0 0.0
    %297 = vmatpush2.msra.mxu0 0.0
    %298 = vmatprep.subr.mxu0 0.0
    %299 = vmatpush2.msra.mxu0 0.0
    %300 = vmatprep.subr.mxu0 0.0
    %301 = vmatpush2.msra.mxu0 0.0
    %302 = vmatprep.subr.mxu0 0.0
    %303 = vmatpush2.msra.mxu0 0.0
    %304 = vmatprep.subr.mxu0 0.0
    %305 = vmatpush2.msra.mxu0 0.0
    %306 = vmatprep.subr.mxu0 0.0
    %307 = vmatpush2.msra.mxu0 0.0
    %308 = vmatprep.mubr.f32.mxu0 0.0
    %309 = vmatmul.mubr.f32.gmra.mxu0 %v239
    %v310 = vpop.f32.mrf.mxu0
    %v311 = vadd.f32 0.0, %v310
    %v312 = vpop.f32.mrf.mxu0
    %313 = vmatprep.mubr.f32.mxu0 0.0
    %314 = vmatmul.mubr.f32.gmra.mxu0 %v242
    %v315 = vpop.f32.mrf.mxu0
    %v316 = vadd.f32 0.0, %v315
    %v317 = vpop.f32.mrf.mxu0
    %318 = vdwg.mxu0
    %v319 = vlaneseq
    %v320 = vshrl.u32 %v319, 7
    %v321 = vsub.s32 3, %v320
    %v322 = vrot.slane %v30, %v321
    %v323 = vadd.f32 %v311, %v322
    %v324 = vadd.f32 %v316, %v322
    %v325 = vmax.f32 %v323, 0.0
    %v326 = vmax.f32 %v324, 0.0
    %vm327 = vcmp.ne.f32.partialorder %v323, %v323
    %vm328 = vcmp.ne.f32.partialorder %v324, %v324
    %v329 = vadd.f32 %v323, 0.0
    %v330 = vadd.f32 %v324, 0.0
    %v331 = vand.u32 2147483647, %v323
    %v332 = vand.u32 2147483647, %v324
    %v333 = vsub.f32 0.0, %v331
    %v334 = vsub.f32 0.0, %v332
    %v335 = vmul.f32 %v333, 1.442695
    %v336 = vpow.pop %v335
    %v337 = vmul.f32 %v334, 1.442695
    %v338 = vpow.pop %v337
    %v339 = vadd.f32 %v336, 1.0
    %v340 = vlog2.pop %v339
    %v341 = vmul.f32 %v340, 0.6931472
    %v342 = vmul.f32 -0.5, %v336
    %v343 = vadd.f32 %v342, 1.0
    %v344 = vmul.f32 %v343, %v336
    %v345 = vand.u32 2147483647, %v336
    %vm346 = vcmp.lt.f32.partialorder %v345, 0.0004427343
    %v347 = vsel %vm346, %v344, %v341
    %v348 = vadd.f32 %v338, 1.0
    %v349 = vlog2.pop %v348
    %v350 = vmul.f32 %v349, 0.6931472
    %v351 = vmul.f32 -0.5, %v338
    %v352 = vadd.f32 %v351, 1.0
    %v353 = vmul.f32 %v352, %v338
    %v354 = vand.u32 2147483647, %v338
    %vm355 = vcmp.lt.f32.partialorder %v354, 0.0004427343
    %v356 = vsel %vm355, %v353, %v350
    %v357 = vadd.f32 %v325, %v347
    %v358 = vadd.f32 %v326, %v356
    %v359 = vsel %vm327, %v329, %v357
    %v360 = vsel %vm328, %v330, %v358
    %v361 = vld [vmem:[%s5] sm:$0xff]
    %v362 = vld [vmem:[%s5 + $0x8] sm:$0xff]
    %v365 = vcombine.high %v359, %v359
    %v367 = vunpack.c.l.s4 1966171168
    %v368 = vunpack.c.0.s8 %v367
    %v369 = vlaneseq
    %v370 = vshrl.u32 %v369, 7
    %v371 = vsub.s32 %v368, %v370
    %v372 = vrot.slane %v359, %v371
    %v374 = vunpack.c.l.s4 1966171168
    %v375 = vunpack.c.0.s8 %v374
    %v376 = vlaneseq
    %v377 = vshrl.u32 %v376, 7
    %v378 = vsub.s32 %v375, %v377
    %v379 = vrot.slane %v365, %v378
    %v380 = vcombine.high %v372, %v372
    %v381 = vcombine.high %v379, %v379
    %v383 = vunpack.c.l.s4 1966171168
    %v384 = vunpack.c.0.s8 %v383
    %v385 = vlaneseq
    %v386 = vshrl.u32 %v385, 7
    %v387 = vsub.s32 %v384, %v386
    %v388 = vrot.slane %v372, %v387
    %v390 = vunpack.c.l.s4 1966171168
    %v391 = vunpack.c.0.s8 %v390
    %v392 = vlaneseq
    %v393 = vshrl.u32 %v392, 7
    %v394 = vsub.s32 %v391, %v393
    %v395 = vrot.slane %v379, %v394
    %v397 = vunpack.c.l.s4 1966171168
    %v398 = vunpack.c.0.s8 %v397
    %v399 = vlaneseq
    %v400 = vshrl.u32 %v399, 7
    %v401 = vsub.s32 %v398, %v400
    %v402 = vrot.slane %v380, %v401
    %v404 = vunpack.c.l.s4 1966171168
    %v405 = vunpack.c.0.s8 %v404
    %v406 = vlaneseq
    %v407 = vshrl.u32 %v406, 7
    %v408 = vsub.s32 %v405, %v407
    %v409 = vrot.slane %v381, %v408
    %v410 = vcombine.high %v388, %v388
    %v411 = vcombine.high %v395, %v395
    %v412 = vcombine.high %v402, %v402
    %v413 = vcombine.high %v409, %v409
    %v414 = vcombine.high %v360, %v360
    %v416 = vunpack.c.l.s4 1966171168
    %v417 = vunpack.c.0.s8 %v416
    %v418 = vlaneseq
    %v419 = vshrl.u32 %v418, 7
    %v420 = vsub.s32 %v417, %v419
    %v421 = vrot.slane %v360, %v420
    %v423 = vunpack.c.l.s4 1966171168
    %v424 = vunpack.c.0.s8 %v423
    %v425 = vlaneseq
    %v426 = vshrl.u32 %v425, 7
    %v427 = vsub.s32 %v424, %v426
    %v428 = vrot.slane %v414, %v427
    %v429 = vcombine.high %v421, %v421
    %v430 = vcombine.high %v428, %v428
    %v432 = vunpack.c.l.s4 1966171168
    %v433 = vunpack.c.0.s8 %v432
    %v434 = vlaneseq
    %v435 = vshrl.u32 %v434, 7
    %v436 = vsub.s32 %v433, %v435
    %v437 = vrot.slane %v421, %v436
    %v439 = vunpack.c.l.s4 1966171168
    %v440 = vunpack.c.0.s8 %v439
    %v441 = vlaneseq
    %v442 = vshrl.u32 %v441, 7
    %v443 = vsub.s32 %v440, %v442
    %v444 = vrot.slane %v428, %v443
    %v446 = vunpack.c.l.s4 1966171168
    %v447 = vunpack.c.0.s8 %v446
    %v448 = vlaneseq
    %v449 = vshrl.u32 %v448, 7
    %v450 = vsub.s32 %v447, %v449
    %v451 = vrot.slane %v429, %v450
    %v453 = vunpack.c.l.s4 1966171168
    %v454 = vunpack.c.0.s8 %v453
    %v455 = vlaneseq
    %v456 = vshrl.u32 %v455, 7
    %v457 = vsub.s32 %v454, %v456
    %v458 = vrot.slane %v430, %v457
    %v459 = vcombine.high %v437, %v437
    %v460 = vcombine.high %v444, %v444
    %v461 = vcombine.high %v451, %v451
    %v462 = vcombine.high %v458, %v458
    %v463 = vlaneseq
    %v464 = vshrl.u32 %v463, 7
    %v465 = vsub.s32 0, %v464
    %v466 = vrot.slane %v388, %v465
    %v467 = vlaneseq
    %v468 = vshrl.u32 %v467, 7
    %v469 = vsub.s32 0, %v468
    %v470 = vrot.slane %v402, %v469
    %v471 = vlaneseq
    %v472 = vshrl.u32 %v471, 7
    %v473 = vsub.s32 0, %v472
    %v474 = vrot.slane %v410, %v473
    %v475 = vlaneseq
    %v476 = vshrl.u32 %v475, 7
    %v477 = vsub.s32 0, %v476
    %v478 = vrot.slane %v412, %v477
    %v479 = vlaneseq
    %v480 = vshrl.u32 %v479, 7
    %v481 = vsub.s32 0, %v480
    %v482 = vrot.slane %v395, %v481
    %v483 = vlaneseq
    %v484 = vshrl.u32 %v483, 7
    %v485 = vsub.s32 0, %v484
    %v486 = vrot.slane %v409, %v485
    %v487 = vlaneseq
    %v488 = vshrl.u32 %v487, 7
    %v489 = vsub.s32 0, %v488
    %v490 = vrot.slane %v411, %v489
    %v491 = vlaneseq
    %v492 = vshrl.u32 %v491, 7
    %v493 = vsub.s32 0, %v492
    %v494 = vrot.slane %v413, %v493
    %v495 = vlaneseq
    %v496 = vshrl.u32 %v495, 7
    %v497 = vsub.s32 0, %v496
    %v498 = vrot.slane %v437, %v497
    %v499 = vlaneseq
    %v500 = vshrl.u32 %v499, 7
    %v501 = vsub.s32 0, %v500
    %v502 = vrot.slane %v451, %v501
    %v503 = vlaneseq
    %v504 = vshrl.u32 %v503, 7
    %v505 = vsub.s32 0, %v504
    %v506 = vrot.slane %v459, %v505
    %v507 = vlaneseq
    %v508 = vshrl.u32 %v507, 7
    %v509 = vsub.s32 0, %v508
    %v510 = vrot.slane %v461, %v509
    %v511 = vlaneseq
    %v512 = vshrl.u32 %v511, 7
    %v513 = vsub.s32 0, %v512
    %v514 = vrot.slane %v444, %v513
    %v515 = vlaneseq
    %v516 = vshrl.u32 %v515, 7
    %v517 = vsub.s32 0, %v516
    %v518 = vrot.slane %v458, %v517
    %v519 = vlaneseq
    %v520 = vshrl.u32 %v519, 7
    %v521 = vsub.s32 0, %v520
    %v522 = vrot.slane %v460, %v521
    %v523 = vlaneseq
    %v524 = vshrl.u32 %v523, 7
    %v525 = vsub.s32 0, %v524
    %v526 = vrot.slane %v462, %v525
    %v543 = vmul.f32 %v466, %v361
    %v544 = vmul.f32 %v466, %v362
    %v545 = vmul.f32 %v470, %v361
    %v546 = vmul.f32 %v470, %v362
    %v547 = vmul.f32 %v474, %v361
    %v548 = vmul.f32 %v474, %v362
    %v549 = vmul.f32 %v478, %v361
    %v550 = vmul.f32 %v478, %v362
    %v551 = vmul.f32 %v482, %v361
    %v552 = vmul.f32 %v482, %v362
    %v553 = vmul.f32 %v486, %v361
    %v554 = vmul.f32 %v486, %v362
    %v555 = vmul.f32 %v490, %v361
    %v556 = vmul.f32 %v490, %v362
    %v557 = vmul.f32 %v494, %v361
    %v558 = vmul.f32 %v494, %v362
    %v559 = vmul.f32 %v498, %v361
    %v560 = vmul.f32 %v498, %v362
    %v561 = vmul.f32 %v502, %v361
    %v562 = vmul.f32 %v502, %v362
    %v563 = vmul.f32 %v506, %v361
    %v564 = vmul.f32 %v506, %v362
    %v565 = vmul.f32 %v510, %v361
    %v566 = vmul.f32 %v510, %v362
    %v567 = vmul.f32 %v514, %v361
    %v568 = vmul.f32 %v514, %v362
    %v569 = vmul.f32 %v518, %v361
    %v570 = vmul.f32 %v518, %v362
    %v571 = vmul.f32 %v522, %v361
    %v572 = vmul.f32 %v522, %v362
    %v573 = vmul.f32 %v526, %v361
    %v574 = vmul.f32 %v526, %v362
    %v575 = vmul.f32 %v543, 1.442695
    %v576 = vpow.pop %v575
    %v577 = vmul.f32 %v544, 1.442695
    %v578 = vpow.pop %v577
    %v579 = vmul.f32 %v545, 1.442695
    %v580 = vpow.pop %v579
    %v581 = vmul.f32 %v546, 1.442695
    %v582 = vpow.pop %v581
    %v583 = vmul.f32 %v547, 1.442695
    %v584 = vpow.pop %v583
    %v585 = vmul.f32 %v548, 1.442695
    %v586 = vpow.pop %v585
    %v587 = vmul.f32 %v549, 1.442695
    %v588 = vpow.pop %v587
    %v589 = vmul.f32 %v550, 1.442695
    %v590 = vpow.pop %v589
    %v591 = vmul.f32 %v551, 1.442695
    %v592 = vpow.pop %v591
    %v593 = vmul.f32 %v552, 1.442695
    %v594 = vpow.pop %v593
    %v595 = vmul.f32 %v553, 1.442695
    %v596 = vpow.pop %v595
    %v597 = vmul.f32 %v554, 1.442695
    %v598 = vpow.pop %v597
    %v599 = vmul.f32 %v555, 1.442695
    %v600 = vpow.pop %v599
    %v601 = vmul.f32 %v556, 1.442695
    %v602 = vpow.pop %v601
    %v603 = vmul.f32 %v557, 1.442695
    %v604 = vpow.pop %v603
    %v605 = vmul.f32 %v558, 1.442695
    %v606 = vpow.pop %v605
    %v607 = vmul.f32 %v559, 1.442695
    %v608 = vpow.pop %v607
    %v609 = vmul.f32 %v560, 1.442695
    %v610 = vpow.pop %v609
    %v611 = vmul.f32 %v561, 1.442695
    %v612 = vpow.pop %v611
    %v613 = vmul.f32 %v562, 1.442695
    %v614 = vpow.pop %v613
    %v615 = vmul.f32 %v563, 1.442695
    %v616 = vpow.pop %v615
    %v617 = vmul.f32 %v564, 1.442695
    %v618 = vpow.pop %v617
    %v619 = vmul.f32 %v565, 1.442695
    %v620 = vpow.pop %v619
    %v621 = vmul.f32 %v566, 1.442695
    %v622 = vpow.pop %v621
    %v623 = vmul.f32 %v567, 1.442695
    %v624 = vpow.pop %v623
    %v625 = vmul.f32 %v568, 1.442695
    %v626 = vpow.pop %v625
    %v627 = vmul.f32 %v569, 1.442695
    %v628 = vpow.pop %v627
    %v629 = vmul.f32 %v570, 1.442695
    %v630 = vpow.pop %v629
    %v631 = vmul.f32 %v571, 1.442695
    %v632 = vpow.pop %v631
    %v633 = vmul.f32 %v572, 1.442695
    %v634 = vpow.pop %v633
    %v635 = vmul.f32 %v573, 1.442695
    %v636 = vpow.pop %v635
    %v637 = vmul.f32 %v574, 1.442695
    %v638 = vpow.pop %v637
    %v639 = vlaneseq
    %v640 = vshrl.u32 %v639, 7
    %v641 = vsub.s32 0, %v640
    %v642 = vrot.slane %v311, %v641
    %s644 = sor.u32 256, 64
    %645 = vbcast.lane.b32.xlu0 %v642, %s644
    %v646 = vpop.permute.xlu0 %645
    %s648 = sor.u32 256, 72
    %649 = vbcast.lane.b32.xlu0 %v642, %s648
    %v650 = vpop.permute.xlu0 %649
    %v651 = vlaneseq
    %v652 = vshrl.u32 %v651, 7
    %v653 = vsub.s32 1, %v652
    %v654 = vrot.slane %v311, %v653
    %s656 = sor.u32 256, 64
    %657 = vbcast.lane.b32.xlu0 %v654, %s656
    %v658 = vpop.permute.xlu0 %657
    %s660 = sor.u32 256, 72
    %661 = vbcast.lane.b32.xlu0 %v654, %s660
    %v662 = vpop.permute.xlu0 %661
    %v663 = vlaneseq
    %v664 = vshrl.u32 %v663, 7
    %v665 = vsub.s32 2, %v664
    %v666 = vrot.slane %v311, %v665
    %s668 = sor.u32 256, 64
    %669 = vbcast.lane.b32.xlu0 %v666, %s668
    %v670 = vpop.permute.xlu0 %669
    %s672 = sor.u32 256, 72
    %673 = vbcast.lane.b32.xlu0 %v666, %s672
    %v674 = vpop.permute.xlu0 %673
    %v675 = vlaneseq
    %v676 = vshrl.u32 %v675, 7
    %v677 = vsub.s32 3, %v676
    %v678 = vrot.slane %v311, %v677
    %s680 = sor.u32 256, 64
    %681 = vbcast.lane.b32.xlu0 %v678, %s680
    %v682 = vpop.permute.xlu0 %681
    %s684 = sor.u32 256, 72
    %685 = vbcast.lane.b32.xlu0 %v678, %s684
    %v686 = vpop.permute.xlu0 %685
    %v687 = vlaneseq
    %v688 = vshrl.u32 %v687, 7
    %v689 = vsub.s32 4, %v688
    %v690 = vrot.slane %v311, %v689
    %s692 = sor.u32 256, 64
    %693 = vbcast.lane.b32.xlu0 %v690, %s692
    %v694 = vpop.permute.xlu0 %693
    %s696 = sor.u32 256, 72
    %697 = vbcast.lane.b32.xlu0 %v690, %s696
    %v698 = vpop.permute.xlu0 %697
    %v699 = vlaneseq
    %v700 = vshrl.u32 %v699, 7
    %v701 = vsub.s32 5, %v700
    %v702 = vrot.slane %v311, %v701
    %s704 = sor.u32 256, 64
    %705 = vbcast.lane.b32.xlu0 %v702, %s704
    %v706 = vpop.permute.xlu0 %705
    %s708 = sor.u32 256, 72
    %709 = vbcast.lane.b32.xlu0 %v702, %s708
    %v710 = vpop.permute.xlu0 %709
    %v711 = vlaneseq
    %v712 = vshrl.u32 %v711, 7
    %v713 = vsub.s32 6, %v712
    %v714 = vrot.slane %v311, %v713
    %s716 = sor.u32 256, 64
    %717 = vbcast.lane.b32.xlu0 %v714, %s716
    %v718 = vpop.permute.xlu0 %717
    %s720 = sor.u32 256, 72
    %721 = vbcast.lane.b32.xlu0 %v714, %s720
    %v722 = vpop.permute.xlu0 %721
    %v723 = vlaneseq
    %v724 = vshrl.u32 %v723, 7
    %v725 = vsub.s32 7, %v724
    %v726 = vrot.slane %v311, %v725
    %s728 = sor.u32 256, 64
    %729 = vbcast.lane.b32.xlu0 %v726, %s728
    %v730 = vpop.permute.xlu0 %729
    %s732 = sor.u32 256, 72
    %733 = vbcast.lane.b32.xlu0 %v726, %s732
    %v734 = vpop.permute.xlu0 %733
    %v735 = vlaneseq
    %v736 = vshrl.u32 %v735, 7
    %v737 = vsub.s32 0, %v736
    %v738 = vrot.slane %v316, %v737
    %s740 = sor.u32 256, 64
    %741 = vbcast.lane.b32.xlu0 %v738, %s740
    %v742 = vpop.permute.xlu0 %741
    %s744 = sor.u32 256, 72
    %745 = vbcast.lane.b32.xlu0 %v738, %s744
    %v746 = vpop.permute.xlu0 %745
    %v747 = vlaneseq
    %v748 = vshrl.u32 %v747, 7
    %v749 = vsub.s32 1, %v748
    %v750 = vrot.slane %v316, %v749
    %s752 = sor.u32 256, 64
    %753 = vbcast.lane.b32.xlu0 %v750, %s752
    %v754 = vpop.permute.xlu0 %753
    %s756 = sor.u32 256, 72
    %757 = vbcast.lane.b32.xlu0 %v750, %s756
    %v758 = vpop.permute.xlu0 %757
    %v759 = vlaneseq
    %v760 = vshrl.u32 %v759, 7
    %v761 = vsub.s32 2, %v760
    %v762 = vrot.slane %v316, %v761
    %s764 = sor.u32 256, 64
    %765 = vbcast.lane.b32.xlu0 %v762, %s764
    %v766 = vpop.permute.xlu0 %765
    %s768 = sor.u32 256, 72
    %769 = vbcast.lane.b32.xlu0 %v762, %s768
    %v770 = vpop.permute.xlu0 %769
    %v771 = vlaneseq
    %v772 = vshrl.u32 %v771, 7
    %v773 = vsub.s32 3, %v772
    %v774 = vrot.slane %v316, %v773
    %s776 = sor.u32 256, 64
    %777 = vbcast.lane.b32.xlu0 %v774, %s776
    %v778 = vpop.permute.xlu0 %777
    %s780 = sor.u32 256, 72
    %781 = vbcast.lane.b32.xlu0 %v774, %s780
    %v782 = vpop.permute.xlu0 %781
    %v783 = vlaneseq
    %v784 = vshrl.u32 %v783, 7
    %v785 = vsub.s32 4, %v784
    %v786 = vrot.slane %v316, %v785
    %s788 = sor.u32 256, 64
    %789 = vbcast.lane.b32.xlu0 %v786, %s788
    %v790 = vpop.permute.xlu0 %789
    %s792 = sor.u32 256, 72
    %793 = vbcast.lane.b32.xlu0 %v786, %s792
    %v794 = vpop.permute.xlu0 %793
    %v795 = vlaneseq
    %v796 = vshrl.u32 %v795, 7
    %v797 = vsub.s32 5, %v796
    %v798 = vrot.slane %v316, %v797
    %s800 = sor.u32 256, 64
    %801 = vbcast.lane.b32.xlu0 %v798, %s800
    %v802 = vpop.permute.xlu0 %801
    %s804 = sor.u32 256, 72
    %805 = vbcast.lane.b32.xlu0 %v798, %s804
    %v806 = vpop.permute.xlu0 %805
    %v807 = vlaneseq
    %v808 = vshrl.u32 %v807, 7
    %v809 = vsub.s32 6, %v808
    %v810 = vrot.slane %v316, %v809
    %s812 = sor.u32 256, 64
    %813 = vbcast.lane.b32.xlu0 %v810, %s812
    %v814 = vpop.permute.xlu0 %813
    %s816 = sor.u32 256, 72
    %817 = vbcast.lane.b32.xlu0 %v810, %s816
    %v818 = vpop.permute.xlu0 %817
    %v819 = vlaneseq
    %v820 = vshrl.u32 %v819, 7
    %v821 = vsub.s32 7, %v820
    %v822 = vrot.slane %v316, %v821
    %s824 = sor.u32 256, 64
    %825 = vbcast.lane.b32.xlu0 %v822, %s824
    %v826 = vpop.permute.xlu0 %825
    %s828 = sor.u32 256, 72
    %829 = vbcast.lane.b32.xlu0 %v822, %s828
    %v830 = vpop.permute.xlu0 %829
    %v831 = vmul.f32 %v359, %v227
    %v832 = vmul.f32 %v360, %v228
    %v835 = vcombine.high %v831, %v831
    %v837 = vunpack.c.l.s4 1966171168
    %v838 = vunpack.c.0.s8 %v837
    %v839 = vlaneseq
    %v840 = vshrl.u32 %v839, 7
    %v841 = vsub.s32 %v838, %v840
    %v842 = vrot.slane %v831, %v841
    %v844 = vunpack.c.l.s4 1966171168
    %v845 = vunpack.c.0.s8 %v844
    %v846 = vlaneseq
    %v847 = vshrl.u32 %v846, 7
    %v848 = vsub.s32 %v845, %v847
    %v849 = vrot.slane %v835, %v848
    %v850 = vcombine.high %v842, %v842
    %v851 = vcombine.high %v849, %v849
    %v853 = vunpack.c.l.s4 1966171168
    %v854 = vunpack.c.0.s8 %v853
    %v855 = vlaneseq
    %v856 = vshrl.u32 %v855, 7
    %v857 = vsub.s32 %v854, %v856
    %v858 = vrot.slane %v842, %v857
    %v860 = vunpack.c.l.s4 1966171168
    %v861 = vunpack.c.0.s8 %v860
    %v862 = vlaneseq
    %v863 = vshrl.u32 %v862, 7
    %v864 = vsub.s32 %v861, %v863
    %v865 = vrot.slane %v849, %v864
    %v867 = vunpack.c.l.s4 1966171168
    %v868 = vunpack.c.0.s8 %v867
    %v869 = vlaneseq
    %v870 = vshrl.u32 %v869, 7
    %v871 = vsub.s32 %v868, %v870
    %v872 = vrot.slane %v850, %v871
    %v874 = vunpack.c.l.s4 1966171168
    %v875 = vunpack.c.0.s8 %v874
    %v876 = vlaneseq
    %v877 = vshrl.u32 %v876, 7
    %v878 = vsub.s32 %v875, %v877
    %v879 = vrot.slane %v851, %v878
    %v880 = vcombine.high %v858, %v858
    %v881 = vcombine.high %v865, %v865
    %v882 = vcombine.high %v872, %v872
    %v883 = vcombine.high %v879, %v879
    %v884 = vcombine.high %v832, %v832
    %v886 = vunpack.c.l.s4 1966171168
    %v887 = vunpack.c.0.s8 %v886
    %v888 = vlaneseq
    %v889 = vshrl.u32 %v888, 7
    %v890 = vsub.s32 %v887, %v889
    %v891 = vrot.slane %v832, %v890
    %v893 = vunpack.c.l.s4 1966171168
    %v894 = vunpack.c.0.s8 %v893
    %v895 = vlaneseq
    %v896 = vshrl.u32 %v895, 7
    %v897 = vsub.s32 %v894, %v896
    %v898 = vrot.slane %v884, %v897
    %v899 = vcombine.high %v891, %v891
    %v900 = vcombine.high %v898, %v898
    %v902 = vunpack.c.l.s4 1966171168
    %v903 = vunpack.c.0.s8 %v902
    %v904 = vlaneseq
    %v905 = vshrl.u32 %v904, 7
    %v906 = vsub.s32 %v903, %v905
    %v907 = vrot.slane %v891, %v906
    %v909 = vunpack.c.l.s4 1966171168
    %v910 = vunpack.c.0.s8 %v909
    %v911 = vlaneseq
    %v912 = vshrl.u32 %v911, 7
    %v913 = vsub.s32 %v910, %v912
    %v914 = vrot.slane %v898, %v913
    %v916 = vunpack.c.l.s4 1966171168
    %v917 = vunpack.c.0.s8 %v916
    %v918 = vlaneseq
    %v919 = vshrl.u32 %v918, 7
    %v920 = vsub.s32 %v917, %v919
    %v921 = vrot.slane %v899, %v920
    %v923 = vunpack.c.l.s4 1966171168
    %v924 = vunpack.c.0.s8 %v923
    %v925 = vlaneseq
    %v926 = vshrl.u32 %v925, 7
    %v927 = vsub.s32 %v924, %v926
    %v928 = vrot.slane %v900, %v927
    %v929 = vcombine.high %v907, %v907
    %v930 = vcombine.high %v914, %v914
    %v931 = vcombine.high %v921, %v921
    %v932 = vcombine.high %v928, %v928
    %v933 = vlaneseq
    %v934 = vshrl.u32 %v933, 7
    %v935 = vsub.s32 0, %v934
    %v936 = vrot.slane %v858, %v935
    %v937 = vlaneseq
    %v938 = vshrl.u32 %v937, 7
    %v939 = vsub.s32 0, %v938
    %v940 = vrot.slane %v872, %v939
    %v941 = vlaneseq
    %v942 = vshrl.u32 %v941, 7
    %v943 = vsub.s32 0, %v942
    %v944 = vrot.slane %v880, %v943
    %v945 = vlaneseq
    %v946 = vshrl.u32 %v945, 7
    %v947 = vsub.s32 0, %v946
    %v948 = vrot.slane %v882, %v947
    %v949 = vlaneseq
    %v950 = vshrl.u32 %v949, 7
    %v951 = vsub.s32 0, %v950
    %v952 = vrot.slane %v865, %v951
    %v953 = vlaneseq
    %v954 = vshrl.u32 %v953, 7
    %v955 = vsub.s32 0, %v954
    %v956 = vrot.slane %v879, %v955
    %v957 = vlaneseq
    %v958 = vshrl.u32 %v957, 7
    %v959 = vsub.s32 0, %v958
    %v960 = vrot.slane %v881, %v959
    %v961 = vlaneseq
    %v962 = vshrl.u32 %v961, 7
    %v963 = vsub.s32 0, %v962
    %v964 = vrot.slane %v883, %v963
    %v965 = vlaneseq
    %v966 = vshrl.u32 %v965, 7
    %v967 = vsub.s32 0, %v966
    %v968 = vrot.slane %v907, %v967
    %v969 = vlaneseq
    %v970 = vshrl.u32 %v969, 7
    %v971 = vsub.s32 0, %v970
    %v972 = vrot.slane %v921, %v971
    %v973 = vlaneseq
    %v974 = vshrl.u32 %v973, 7
    %v975 = vsub.s32 0, %v974
    %v976 = vrot.slane %v929, %v975
    %v977 = vlaneseq
    %v978 = vshrl.u32 %v977, 7
    %v979 = vsub.s32 0, %v978
    %v980 = vrot.slane %v931, %v979
    %v981 = vlaneseq
    %v982 = vshrl.u32 %v981, 7
    %v983 = vsub.s32 0, %v982
    %v984 = vrot.slane %v914, %v983
    %v985 = vlaneseq
    %v986 = vshrl.u32 %v985, 7
    %v987 = vsub.s32 0, %v986
    %v988 = vrot.slane %v928, %v987
    %v989 = vlaneseq
    %v990 = vshrl.u32 %v989, 7
    %v991 = vsub.s32 0, %v990
    %v992 = vrot.slane %v930, %v991
    %v993 = vlaneseq
    %v994 = vshrl.u32 %v993, 7
    %v995 = vsub.s32 0, %v994
    %v996 = vrot.slane %v932, %v995
    %v1013 = vmul.f32 %v646, %v936
    %v1014 = vmul.f32 %v650, %v936
    %v1015 = vmul.f32 %v658, %v940
    %v1016 = vmul.f32 %v662, %v940
    %v1017 = vmul.f32 %v670, %v944
    %v1018 = vmul.f32 %v674, %v944
    %v1019 = vmul.f32 %v682, %v948
    %v1020 = vmul.f32 %v686, %v948
    %v1021 = vmul.f32 %v694, %v952
    %v1022 = vmul.f32 %v698, %v952
    %v1023 = vmul.f32 %v706, %v956
    %v1024 = vmul.f32 %v710, %v956
    %v1025 = vmul.f32 %v718, %v960
    %v1026 = vmul.f32 %v722, %v960
    %v1027 = vmul.f32 %v730, %v964
    %v1028 = vmul.f32 %v734, %v964
    %v1029 = vmul.f32 %v742, %v968
    %v1030 = vmul.f32 %v746, %v968
    %v1031 = vmul.f32 %v754, %v972
    %v1032 = vmul.f32 %v758, %v972
    %v1033 = vmul.f32 %v766, %v976
    %v1034 = vmul.f32 %v770, %v976
    %v1035 = vmul.f32 %v778, %v980
    %v1036 = vmul.f32 %v782, %v980
    %v1037 = vmul.f32 %v790, %v984
    %v1038 = vmul.f32 %v794, %v984
    %v1039 = vmul.f32 %v802, %v988
    %v1040 = vmul.f32 %v806, %v988
    %v1041 = vmul.f32 %v814, %v992
    %v1042 = vmul.f32 %v818, %v992
    %v1043 = vmul.f32 %v826, %v996
    %v1044 = vmul.f32 %v830, %v996
    %s1046 = sor.u32 256, 80
    %1047 = vbcast.lane.b32.xlu0 %v642, %s1046
    %v1048 = vpop.permute.xlu0 %1047
    %s1050 = sor.u32 256, 88
    %1051 = vbcast.lane.b32.xlu0 %v642, %s1050
    %v1052 = vpop.permute.xlu0 %1051
    %s1054 = sor.u32 256, 80
    %1055 = vbcast.lane.b32.xlu0 %v654, %s1054
    %v1056 = vpop.permute.xlu0 %1055
    %s1058 = sor.u32 256, 88
    %1059 = vbcast.lane.b32.xlu0 %v654, %s1058
    %v1060 = vpop.permute.xlu0 %1059
    %s1062 = sor.u32 256, 80
    %1063 = vbcast.lane.b32.xlu0 %v666, %s1062
    %v1064 = vpop.permute.xlu0 %1063
    %s1066 = sor.u32 256, 88
    %1067 = vbcast.lane.b32.xlu0 %v666, %s1066
    %v1068 = vpop.permute.xlu0 %1067
    %s1070 = sor.u32 256, 80
    %1071 = vbcast.lane.b32.xlu0 %v678, %s1070
    %v1072 = vpop.permute.xlu0 %1071
    %s1074 = sor.u32 256, 88
    %1075 = vbcast.lane.b32.xlu0 %v678, %s1074
    %v1076 = vpop.permute.xlu0 %1075
    %s1078 = sor.u32 256, 80
    %1079 = vbcast.lane.b32.xlu0 %v690, %s1078
    %v1080 = vpop.permute.xlu0 %1079
    %s1082 = sor.u32 256, 88
    %1083 = vbcast.lane.b32.xlu0 %v690, %s1082
    %v1084 = vpop.permute.xlu0 %1083
    %s1086 = sor.u32 256, 80
    %1087 = vbcast.lane.b32.xlu0 %v702, %s1086
    %v1088 = vpop.permute.xlu0 %1087
    %s1090 = sor.u32 256, 88
    %1091 = vbcast.lane.b32.xlu0 %v702, %s1090
    %v1092 = vpop.permute.xlu0 %1091
    %s1094 = sor.u32 256, 80
    %1095 = vbcast.lane.b32.xlu0 %v714, %s1094
    %v1096 = vpop.permute.xlu0 %1095
    %s1098 = sor.u32 256, 88
    %1099 = vbcast.lane.b32.xlu0 %v714, %s1098
    %v1100 = vpop.permute.xlu0 %1099
    %s1102 = sor.u32 256, 80
    %1103 = vbcast.lane.b32.xlu0 %v726, %s1102
    %v1104 = vpop.permute.xlu0 %1103
    %s1106 = sor.u32 256, 88
    %1107 = vbcast.lane.b32.xlu0 %v726, %s1106
    %v1108 = vpop.permute.xlu0 %1107
    %s1110 = sor.u32 256, 80
    %1111 = vbcast.lane.b32.xlu0 %v738, %s1110
    %v1112 = vpop.permute.xlu0 %1111
    %s1114 = sor.u32 256, 88
    %1115 = vbcast.lane.b32.xlu0 %v738, %s1114
    %v1116 = vpop.permute.xlu0 %1115
    %s1118 = sor.u32 256, 80
    %1119 = vbcast.lane.b32.xlu0 %v750, %s1118
    %v1120 = vpop.permute.xlu0 %1119
    %s1122 = sor.u32 256, 88
    %1123 = vbcast.lane.b32.xlu0 %v750, %s1122
    %v1124 = vpop.permute.xlu0 %1123
    %s1126 = sor.u32 256, 80
    %1127 = vbcast.lane.b32.xlu0 %v762, %s1126
    %v1128 = vpop.permute.xlu0 %1127
    %s1130 = sor.u32 256, 88
    %1131 = vbcast.lane.b32.xlu0 %v762, %s1130
    %v1132 = vpop.permute.xlu0 %1131
    %s1134 = sor.u32 256, 80
    %1135 = vbcast.lane.b32.xlu0 %v774, %s1134
    %v1136 = vpop.permute.xlu0 %1135
    %s1138 = sor.u32 256, 88
    %1139 = vbcast.lane.b32.xlu0 %v774, %s1138
    %v1140 = vpop.permute.xlu0 %1139
    %s1142 = sor.u32 256, 80
    %1143 = vbcast.lane.b32.xlu0 %v786, %s1142
    %v1144 = vpop.permute.xlu0 %1143
    %s1146 = sor.u32 256, 88
    %1147 = vbcast.lane.b32.xlu0 %v786, %s1146
    %v1148 = vpop.permute.xlu0 %1147
    %s1150 = sor.u32 256, 80
    %1151 = vbcast.lane.b32.xlu0 %v798, %s1150
    %v1152 = vpop.permute.xlu0 %1151
    %s1154 = sor.u32 256, 88
    %1155 = vbcast.lane.b32.xlu0 %v798, %s1154
    %v1156 = vpop.permute.xlu0 %1155
    %s1158 = sor.u32 256, 80
    %1159 = vbcast.lane.b32.xlu0 %v810, %s1158
    %v1160 = vpop.permute.xlu0 %1159
    %s1162 = sor.u32 256, 88
    %1163 = vbcast.lane.b32.xlu0 %v810, %s1162
    %v1164 = vpop.permute.xlu0 %1163
    %s1166 = sor.u32 256, 80
    %1167 = vbcast.lane.b32.xlu0 %v822, %s1166
    %v1168 = vpop.permute.xlu0 %1167
    %s1170 = sor.u32 256, 88
    %1171 = vbcast.lane.b32.xlu0 %v822, %s1170
    %v1172 = vpop.permute.xlu0 %1171
    %v1173 = vmul.f32 %v576, 0.0
    %v1174 = vmul.f32 %v578, 0.0
    %v1175 = vmul.f32 %v608, 0.0
    %v1176 = vmul.f32 %v610, 0.0
    %v1177 = vadd.f32 %v1173, %v1013
    %v1178 = vadd.f32 %v1174, %v1014
    %v1179 = vadd.f32 %v1175, %v1029
    %v1180 = vadd.f32 %v1176, %v1030
    %v1181 = vmul.f32 %v1177, %v1048
    %v1182 = vmul.f32 %v1178, %v1052
    %v1183 = vmul.f32 %v1179, %v1112
    %v1184 = vmul.f32 %v1180, %v1116
    %v1185 = vsel %vm237, %v1181, 0.0
    %v1186 = vsel %vm237, %v1182, 0.0
    %v1187 = vadd.f32 %v1185, %v1186
    %v1188 = vrot.slane %v1187, 4
    %v1189 = vadd.f32 %v1187, %v1188
    %v1190 = vrot.slane %v1189, 2
    %v1191 = vadd.f32 %v1189, %v1190
    %v1192 = vrot.slane %v1191, 1
    %v1193 = vadd.f32 %v1191, %v1192
    %v1194 = vsel %vm237, %v1183, 0.0
    %v1195 = vsel %vm237, %v1184, 0.0
    %v1196 = vadd.f32 %v1194, %v1195
    %v1197 = vrot.slane %v1196, 4
    %v1198 = vadd.f32 %v1196, %v1197
    %v1199 = vrot.slane %v1198, 2
    %v1200 = vadd.f32 %v1198, %v1199
    %v1201 = vrot.slane %v1200, 1
    %v1202 = vadd.f32 %v1200, %v1201
    %v1203 = vmul.f32 %v580, %v1177
    %v1204 = vmul.f32 %v582, %v1178
    %v1205 = vmul.f32 %v612, %v1179
    %v1206 = vmul.f32 %v614, %v1180
    %v1207 = vadd.f32 %v1203, %v1015
    %v1208 = vadd.f32 %v1204, %v1016
    %v1209 = vadd.f32 %v1205, %v1031
    %v1210 = vadd.f32 %v1206, %v1032
    %v1211 = vmul.f32 %v1207, %v1056
    %v1212 = vmul.f32 %v1208, %v1060
    %v1213 = vmul.f32 %v1209, %v1120
    %v1214 = vmul.f32 %v1210, %v1124
    %v1215 = vsel %vm237, %v1211, 0.0
    %v1216 = vsel %vm237, %v1212, 0.0
    %v1217 = vadd.f32 %v1215, %v1216
    %v1218 = vrot.slane %v1217, 4
    %v1219 = vadd.f32 %v1217, %v1218
    %v1220 = vrot.slane %v1219, 2
    %v1221 = vadd.f32 %v1219, %v1220
    %v1222 = vrot.slane %v1221, 1
    %v1223 = vadd.f32 %v1221, %v1222
    %v1224 = vsel %vm237, %v1213, 0.0
    %v1225 = vsel %vm237, %v1214, 0.0
    %v1226 = vadd.f32 %v1224, %v1225
    %v1227 = vrot.slane %v1226, 4
    %v1228 = vadd.f32 %v1226, %v1227
    %v1229 = vrot.slane %v1228, 2
    %v1230 = vadd.f32 %v1228, %v1229
    %v1231 = vrot.slane %v1230, 1
    %v1232 = vadd.f32 %v1230, %v1231
    %v1233 = vmul.f32 %v584, %v1207
    %v1234 = vmul.f32 %v586, %v1208
    %v1235 = vmul.f32 %v616, %v1209
    %v1236 = vmul.f32 %v618, %v1210
    %v1237 = vadd.f32 %v1233, %v1017
    %v1238 = vadd.f32 %v1234, %v1018
    %v1239 = vadd.f32 %v1235, %v1033
    %v1240 = vadd.f32 %v1236, %v1034
    %v1241 = vmul.f32 %v1237, %v1064
    %v1242 = vmul.f32 %v1238, %v1068
    %v1243 = vmul.f32 %v1239, %v1128
    %v1244 = vmul.f32 %v1240, %v1132
    %v1245 = vsel %vm237, %v1241, 0.0
    %v1246 = vsel %vm237, %v1242, 0.0
    %v1247 = vadd.f32 %v1245, %v1246
    %v1248 = vrot.slane %v1247, 4
    %v1249 = vadd.f32 %v1247, %v1248
    %v1250 = vrot.slane %v1249, 2
    %v1251 = vadd.f32 %v1249, %v1250
    %v1252 = vrot.slane %v1251, 1
    %v1253 = vadd.f32 %v1251, %v1252
    %v1254 = vsel %vm237, %v1243, 0.0
    %v1255 = vsel %vm237, %v1244, 0.0
    %v1256 = vadd.f32 %v1254, %v1255
    %v1257 = vrot.slane %v1256, 4
    %v1258 = vadd.f32 %v1256, %v1257
    %v1259 = vrot.slane %v1258, 2
    %v1260 = vadd.f32 %v1258, %v1259
    %v1261 = vrot.slane %v1260, 1
    %v1262 = vadd.f32 %v1260, %v1261
    %v1263 = vmul.f32 %v588, %v1237
    %v1264 = vmul.f32 %v590, %v1238
    %v1265 = vmul.f32 %v620, %v1239
    %v1266 = vmul.f32 %v622, %v1240
    %v1267 = vadd.f32 %v1263, %v1019
    %v1268 = vadd.f32 %v1264, %v1020
    %v1269 = vadd.f32 %v1265, %v1035
    %v1270 = vadd.f32 %v1266, %v1036
    %v1271 = vmul.f32 %v1267, %v1072
    %v1272 = vmul.f32 %v1268, %v1076
    %v1273 = vmul.f32 %v1269, %v1136
    %v1274 = vmul.f32 %v1270, %v1140
    %v1275 = vsel %vm237, %v1271, 0.0
    %v1276 = vsel %vm237, %v1272, 0.0
    %v1277 = vadd.f32 %v1275, %v1276
    %v1278 = vrot.slane %v1277, 4
    %v1279 = vadd.f32 %v1277, %v1278
    %v1280 = vrot.slane %v1279, 2
    %v1281 = vadd.f32 %v1279, %v1280
    %v1282 = vrot.slane %v1281, 1
    %v1283 = vadd.f32 %v1281, %v1282
    %v1284 = vsel %vm237, %v1273, 0.0
    %v1285 = vsel %vm237, %v1274, 0.0
    %v1286 = vadd.f32 %v1284, %v1285
    %v1287 = vrot.slane %v1286, 4
    %v1288 = vadd.f32 %v1286, %v1287
    %v1289 = vrot.slane %v1288, 2
    %v1290 = vadd.f32 %v1288, %v1289
    %v1291 = vrot.slane %v1290, 1
    %v1292 = vadd.f32 %v1290, %v1291
    %v1293 = vmul.f32 %v592, %v1267
    %v1294 = vmul.f32 %v594, %v1268
    %v1295 = vmul.f32 %v624, %v1269
    %v1296 = vmul.f32 %v626, %v1270
    %v1297 = vadd.f32 %v1293, %v1021
    %v1298 = vadd.f32 %v1294, %v1022
    %v1299 = vadd.f32 %v1295, %v1037
    %v1300 = vadd.f32 %v1296, %v1038
    %v1301 = vmul.f32 %v1297, %v1080
    %v1302 = vmul.f32 %v1298, %v1084
    %v1303 = vmul.f32 %v1299, %v1144
    %v1304 = vmul.f32 %v1300, %v1148
    %v1305 = vsel %vm237, %v1301, 0.0
    %v1306 = vsel %vm237, %v1302, 0.0
    %v1307 = vadd.f32 %v1305, %v1306
    %v1308 = vrot.slane %v1307, 4
    %v1309 = vadd.f32 %v1307, %v1308
    %v1310 = vrot.slane %v1309, 2
    %v1311 = vadd.f32 %v1309, %v1310
    %v1312 = vrot.slane %v1311, 1
    %v1313 = vadd.f32 %v1311, %v1312
    %v1314 = vsel %vm237, %v1303, 0.0
    %v1315 = vsel %vm237, %v1304, 0.0
    %v1316 = vadd.f32 %v1314, %v1315
    %v1317 = vrot.slane %v1316, 4
    %v1318 = vadd.f32 %v1316, %v1317
    %v1319 = vrot.slane %v1318, 2
    %v1320 = vadd.f32 %v1318, %v1319
    %v1321 = vrot.slane %v1320, 1
    %v1322 = vadd.f32 %v1320, %v1321
    %v1323 = vmul.f32 %v596, %v1297
    %v1324 = vmul.f32 %v598, %v1298
    %v1325 = vmul.f32 %v628, %v1299
    %v1326 = vmul.f32 %v630, %v1300
    %v1327 = vadd.f32 %v1323, %v1023
    %v1328 = vadd.f32 %v1324, %v1024
    %v1329 = vadd.f32 %v1325, %v1039
    %v1330 = vadd.f32 %v1326, %v1040
    %v1331 = vmul.f32 %v1327, %v1088
    %v1332 = vmul.f32 %v1328, %v1092
    %v1333 = vmul.f32 %v1329, %v1152
    %v1334 = vmul.f32 %v1330, %v1156
    %v1335 = vsel %vm237, %v1331, 0.0
    %v1336 = vsel %vm237, %v1332, 0.0
    %v1337 = vadd.f32 %v1335, %v1336
    %v1338 = vrot.slane %v1337, 4
    %v1339 = vadd.f32 %v1337, %v1338
    %v1340 = vrot.slane %v1339, 2
    %v1341 = vadd.f32 %v1339, %v1340
    %v1342 = vrot.slane %v1341, 1
    %v1343 = vadd.f32 %v1341, %v1342
    %v1344 = vsel %vm237, %v1333, 0.0
    %v1345 = vsel %vm237, %v1334, 0.0
    %v1346 = vadd.f32 %v1344, %v1345
    %v1347 = vrot.slane %v1346, 4
    %v1348 = vadd.f32 %v1346, %v1347
    %v1349 = vrot.slane %v1348, 2
    %v1350 = vadd.f32 %v1348, %v1349
    %v1351 = vrot.slane %v1350, 1
    %v1352 = vadd.f32 %v1350, %v1351
    %v1353 = vmul.f32 %v600, %v1327
    %v1354 = vmul.f32 %v602, %v1328
    %v1355 = vmul.f32 %v632, %v1329
    %v1356 = vmul.f32 %v634, %v1330
    %v1357 = vadd.f32 %v1353, %v1025
    %v1358 = vadd.f32 %v1354, %v1026
    %v1359 = vadd.f32 %v1355, %v1041
    %v1360 = vadd.f32 %v1356, %v1042
    %v1361 = vmul.f32 %v1357, %v1096
    %v1362 = vmul.f32 %v1358, %v1100
    %v1363 = vmul.f32 %v1359, %v1160
    %v1364 = vmul.f32 %v1360, %v1164
    %v1365 = vsel %vm237, %v1361, 0.0
    %v1366 = vsel %vm237, %v1362, 0.0
    %v1367 = vadd.f32 %v1365, %v1366
    %v1368 = vrot.slane %v1367, 4
    %v1369 = vadd.f32 %v1367, %v1368
    %v1370 = vrot.slane %v1369, 2
    %v1371 = vadd.f32 %v1369, %v1370
    %v1372 = vrot.slane %v1371, 1
    %v1373 = vadd.f32 %v1371, %v1372
    %v1374 = vsel %vm237, %v1363, 0.0
    %v1375 = vsel %vm237, %v1364, 0.0
    %v1376 = vadd.f32 %v1374, %v1375
    %v1377 = vrot.slane %v1376, 4
    %v1378 = vadd.f32 %v1376, %v1377
    %v1379 = vrot.slane %v1378, 2
    %v1380 = vadd.f32 %v1378, %v1379
    %v1381 = vrot.slane %v1380, 1
    %v1382 = vadd.f32 %v1380, %v1381
    %v1383 = vmul.f32 %v604, %v1357
    %v1384 = vmul.f32 %v606, %v1358
    %v1385 = vmul.f32 %v636, %v1359
    %v1386 = vmul.f32 %v638, %v1360
    %v1387 = vadd.f32 %v1383, %v1027
    %v1388 = vadd.f32 %v1384, %v1028
    %v1389 = vadd.f32 %v1385, %v1043
    %v1390 = vadd.f32 %v1386, %v1044
    %v1391 = vmul.f32 %v1387, %v1104
    %v1392 = vmul.f32 %v1388, %v1108
    %v1393 = vmul.f32 %v1389, %v1168
    %v1394 = vmul.f32 %v1390, %v1172
    %v1395 = vsel %vm237, %v1391, 0.0
    %v1396 = vsel %vm237, %v1392, 0.0
    %v1397 = vadd.f32 %v1395, %v1396
    %v1398 = vrot.slane %v1397, 4
    %v1399 = vadd.f32 %v1397, %v1398
    %v1400 = vrot.slane %v1399, 2
    %v1401 = vadd.f32 %v1399, %v1400
    %v1402 = vrot.slane %v1401, 1
    %v1403 = vadd.f32 %v1401, %v1402
    %v1404 = vsel %vm237, %v1393, 0.0
    %v1405 = vsel %vm237, %v1394, 0.0
    %v1406 = vadd.f32 %v1404, %v1405
    %v1407 = vrot.slane %v1406, 4
    %v1408 = vadd.f32 %v1406, %v1407
    %v1409 = vrot.slane %v1408, 2
    %v1410 = vadd.f32 %v1408, %v1409
    %v1411 = vrot.slane %v1410, 1
    %v1412 = vadd.f32 %v1410, %v1411
    %vm1413 = vcmask 1040384
    %v1414 = vsel %vm1413, %v1193, %v1223
    %v1415 = vsel %vm1413, %v1202, %v1232
    %vm1416 = vcmask 1041408
    %v1417 = vsel %vm1416, %v1414, %v1253
    %v1418 = vsel %vm1416, %v1415, %v1262
    %v1419 = vsel %vm130, %v1417, %v1283
    %v1420 = vsel %vm130, %v1418, %v1292
    %v1421 = vsel %vm45, %v1419, %v1313
    %v1422 = vsel %vm45, %v1420, %v1322
    %v1423 = vsel %vm204, %v1421, %v1343
    %v1424 = vsel %vm204, %v1422, %v1352
    %v1425 = vsel %vm181, %v1423, %v1373
    %v1426 = vsel %vm181, %v1424, %v1382
    %v1427 = vsel %vm158, %v1425, %v1403
    %v1428 = vsel %vm158, %v1426, %v1412
    %v1429 = vlaneseq
    %v1430 = vshrl.u32 %v1429, 7
    %v1431 = vsub.s32 5, %v1430
    %v1432 = vrot.slane %v30, %v1431
    %v1433 = vmul.f32 %v1432, %v227
    %v1434 = vmul.f32 %v1432, %v228
    %v1435 = vadd.f32 %v1427, %v1433
    %v1436 = vadd.f32 %v1428, %v1434
    %v1437 = vxor.u32 %v116, 2147483648
    %v1438 = vxor.u32 %v121, 2147483648
    %v1439 = vmul.f32 %v1437, 1.442695
    %v1440 = vpow.pop %v1439
    %v1441 = vmul.f32 %v1438, 1.442695
    %v1442 = vpow.pop %v1441
    %v1443 = vadd.f32 %v1440, 1.0
    %v1444 = vadd.f32 %v1442, 1.0
    %v1445 = vrcp.pop %v1443
    %v1446 = vmul.f32 1.0, %v1445
    %v1447 = vrcp.pop %v1444
    %v1448 = vmul.f32 1.0, %v1447
    %v1449 = vmul.f32 %v116, %v1446
    %v1450 = vmul.f32 %v121, %v1448
    %1453 = vrot.lane.b32.xlu0 %v1449, 64
    %v1454 = vpop.permute.xlu0 %1453
    %1455 = vrot.lane.b32.xlu0 %v1450, 64
    %v1456 = vpop.permute.xlu0 %1455
    %v1459 = vmul.f32 %v1435, %v1454
    %v1460 = vmul.f32 %v1436, %v1456
    %v1461 = vld [vmem:[%s6] sm:$0xff]
    %v1462 = vld [vmem:[%s6 + $0x8] sm:$0xff]
    %v1463 = vld [vmem:[%s6 + $0x10] sm:$0xff]
    %v1464 = vld [vmem:[%s6 + $0x18] sm:$0xff]
    %v1465 = vld [vmem:[%s6 + $0x20] sm:$0xff]
    %v1466 = vld [vmem:[%s6 + $0x28] sm:$0xff]
    %v1467 = vld [vmem:[%s6 + $0x30] sm:$0xff]
    %v1468 = vld [vmem:[%s6 + $0x38] sm:$0xff]
    %v1470 = vsel %vm237, %v1459, 0
    %v1473 = vsel %vm237, %v1460, 0
    %1475 = vmatprep.subr.mxu0 0.0
    %1476 = vmatpush1.msra.mxu0 0.0
    %1477 = vmatprep.subr.mxu0 0.0
    %1478 = vmatpush1.msra.mxu0 0.0
    %1479 = vmatprep.subr.mxu0 0.0
    %1480 = vmatpush1.msra.mxu0 0.0
    %1481 = vmatprep.subr.mxu0 0.0
    %1482 = vmatpush1.msra.mxu0 0.0
    %1483 = vmatprep.subr.mxu0 0.0
    %1484 = vmatpush1.msra.mxu0 0.0
    %1485 = vmatprep.subr.mxu0 0.0
    %1486 = vmatpush1.msra.mxu0 0.0
    %1487 = vmatprep.subr.mxu0 0.0
    %1488 = vmatpush1.msra.mxu0 0.0
    %1489 = vmatprep.subr.mxu0 0.0
    %1490 = vmatpush1.msra.mxu0 0.0
    %1491 = vmatprep.subr.mxu0 0.0
    %1492 = vmatpush1.msra.mxu0 %v1468
    %1493 = vmatprep.subr.mxu0 0.0
    %1494 = vmatpush1.msra.mxu0 %v1467
    %1495 = vmatprep.subr.mxu0 0.0
    %1496 = vmatpush1.msra.mxu0 %v1466
    %1497 = vmatprep.subr.mxu0 0.0
    %1498 = vmatpush1.msra.mxu0 %v1465
    %1499 = vmatprep.subr.mxu0 0.0
    %1500 = vmatpush1.msra.mxu0 %v1464
    %1501 = vmatprep.subr.mxu0 0.0
    %1502 = vmatpush1.msra.mxu0 %v1463
    %1503 = vmatprep.subr.mxu0 0.0
    %1504 = vmatpush1.msra.mxu0 %v1462
    %1505 = vmatprep.subr.mxu0 0.0
    %1506 = vmatpush1.msra.mxu0 %v1461
    %1507 = vmatprep.subr.mxu0 0.0
    %1508 = vmatpush2.msra.mxu0 0.0
    %1509 = vmatprep.subr.mxu0 0.0
    %1510 = vmatpush2.msra.mxu0 0.0
    %1511 = vmatprep.subr.mxu0 0.0
    %1512 = vmatpush2.msra.mxu0 0.0
    %1513 = vmatprep.subr.mxu0 0.0
    %1514 = vmatpush2.msra.mxu0 0.0
    %1515 = vmatprep.subr.mxu0 0.0
    %1516 = vmatpush2.msra.mxu0 0.0
    %1517 = vmatprep.subr.mxu0 0.0
    %1518 = vmatpush2.msra.mxu0 0.0
    %1519 = vmatprep.subr.mxu0 0.0
    %1520 = vmatpush2.msra.mxu0 0.0
    %1521 = vmatprep.subr.mxu0 0.0
    %1522 = vmatpush2.msra.mxu0 0.0
    %1523 = vmatprep.subr.mxu0 0.0
    %1524 = vmatpush2.msra.mxu0 0.0
    %1525 = vmatprep.subr.mxu0 0.0
    %1526 = vmatpush2.msra.mxu0 0.0
    %1527 = vmatprep.subr.mxu0 0.0
    %1528 = vmatpush2.msra.mxu0 0.0
    %1529 = vmatprep.subr.mxu0 0.0
    %1530 = vmatpush2.msra.mxu0 0.0
    %1531 = vmatprep.subr.mxu0 0.0
    %1532 = vmatpush2.msra.mxu0 0.0
    %1533 = vmatprep.subr.mxu0 0.0
    %1534 = vmatpush2.msra.mxu0 0.0
    %1535 = vmatprep.subr.mxu0 0.0
    %1536 = vmatpush2.msra.mxu0 0.0
    %1537 = vmatprep.subr.mxu0 0.0
    %1538 = vmatpush2.msra.mxu0 0.0
    %1539 = vmatprep.mubr.f32.mxu0 0.0
    %1540 = vmatmul.mubr.f32.gmra.mxu0 %v1470
    %v1541 = vpop.f32.mrf.mxu0
    %v1542 = vadd.f32 0.0, %v1541
    %v1543 = vpop.f32.mrf.mxu0
    %1544 = vmatprep.mubr.f32.mxu0 0.0
    %1545 = vmatmul.mubr.f32.gmra.mxu0 %v1473
    %v1546 = vpop.f32.mrf.mxu0
    %v1547 = vadd.f32 0.0, %v1546
    %v1548 = vpop.f32.mrf.mxu0
    %1549 = vdwg.mxu0
    %v1552 = vrot.slane %v1542, 5
    %v1553 = vrot.slane %v1547, 5
    %v1556 = vsel %vm130, 0.0, %v1552
    %v1557 = vsel %vm130, 0.0, %v1553
    %s1558 = scalar_lea.vmem %s3, 4
    %v1559 = vld [vmem:[%s1558] sm:$0xf]
    %v1560 = vlaneseq
    %v1561 = vshrl.u32 %v1560, 7
    %v1562 = vsub.s32 0, %v1561
    %v1563 = vrot.slane %v1559, %v1562
    %v1564 = vmul.f32 %v1563, %v1556
    %v1565 = vmul.f32 %v1563, %v1557
    %v1566 = vlaneseq
    %v1567 = vshrl.u32 %v1566, 7
    %v1568 = vsub.s32 2, %v1567
    %v1569 = vrot.slane %v30, %v1568
    %v1570 = vadd.f32 %v1569, %v1564
    %v1571 = vadd.f32 %v1569, %v1565
    %v1572 = vlaneseq
    %v1573 = vshrl.u32 %v1572, 7
    %v1574 = vsub.s32 1, %v1573
    %v1575 = vrot.slane %v1559, %v1574
    %v1576 = vmul.f32 %v1575, %v1556
    %v1577 = vmul.f32 %v1575, %v1552
    %v1578 = vmul.f32 %v1575, %v1557
    %v1579 = vmul.f32 %v1575, %v1553
    %v1584 = vrot.slane %v1576, 1
    %v1585 = vrot.slane %v1577, 1
    %v1586 = vsel %vm158, %v1584, %v1585
    %v1587 = vrot.slane %v1578, 1
    %v1588 = vrot.slane %v1579, 1
    %v1589 = vsel %vm158, %v1587, %v1588
    %v1592 = vadd.f32 %v1570, %v1586
    %v1593 = vadd.f32 %v1571, %v1589
    %v1594 = vlaneseq
    %v1595 = vshrl.u32 %v1594, 7
    %v1596 = vsub.s32 2, %v1595
    %v1597 = vrot.slane %v1559, %v1596
    %v1598 = vmul.f32 %v1597, %v1556
    %v1599 = vmul.f32 %v1597, %v1552
    %v1600 = vmul.f32 %v1597, %v1557
    %v1601 = vmul.f32 %v1597, %v1553
    %v1606 = vrot.slane %v1598, 2
    %v1607 = vrot.slane %v1599, 2
    %v1608 = vsel %vm181, %v1606, %v1607
    %v1609 = vrot.slane %v1600, 2
    %v1610 = vrot.slane %v1601, 2
    %v1611 = vsel %vm181, %v1609, %v1610
    %v1614 = vadd.f32 %v1592, %v1608
    %v1615 = vadd.f32 %v1593, %v1611
    %v1616 = vlaneseq
    %v1617 = vshrl.u32 %v1616, 7
    %v1618 = vsub.s32 3, %v1617
    %v1619 = vrot.slane %v1559, %v1618
    %v1620 = vmul.f32 %v1619, %v1556
    %v1621 = vmul.f32 %v1619, %v1552
    %v1622 = vmul.f32 %v1619, %v1557
    %v1623 = vmul.f32 %v1619, %v1553
    %v1628 = vrot.slane %v1620, 3
    %v1629 = vrot.slane %v1621, 3
    %v1630 = vsel %vm204, %v1628, %v1629
    %v1631 = vrot.slane %v1622, 3
    %v1632 = vrot.slane %v1623, 3
    %v1633 = vsel %vm204, %v1631, %v1632
    %v1636 = vadd.f32 %v1614, %v1630
    %v1637 = vadd.f32 %v1615, %v1633
    %v1638 = vxor.u32 %v1636, 2147483648
    %v1639 = vxor.u32 %v1637, 2147483648
    %v1640 = vmul.f32 %v1638, 1.442695
    %v1641 = vpow.pop %v1640
    %v1642 = vmul.f32 %v1639, 1.442695
    %v1643 = vpow.pop %v1642
    %v1644 = vadd.f32 %v1641, 1.0
    %v1645 = vadd.f32 %v1643, 1.0
    %v1646 = vrcp.pop %v1644
    %v1647 = vmul.f32 1.0, %v1646
    %v1648 = vrcp.pop %v1645
    %v1649 = vmul.f32 1.0, %v1648
    %v1650 = vmul.f32 %v1636, %v1647
    %v1651 = vmul.f32 %v1637, %v1649
    %s1652 = scalar_lea.vmem %s4, 64
    %v1653 = vld [vmem:[%s1652] sm:$0xff]
    %v1654 = vld [vmem:[%s1652 + $0x8] sm:$0xff]
    %v1655 = vld [vmem:[%s1652 + $0x10] sm:$0xff]
    %v1656 = vld [vmem:[%s1652 + $0x18] sm:$0xff]
    %v1657 = vld [vmem:[%s1652 + $0x20] sm:$0xff]
    %v1658 = vld [vmem:[%s1652 + $0x28] sm:$0xff]
    %v1659 = vld [vmem:[%s1652 + $0x30] sm:$0xff]
    %v1660 = vld [vmem:[%s1652 + $0x38] sm:$0xff]
    %v1662 = vsel %vm237, %v1650, 0
    %v1665 = vsel %vm237, %v1651, 0
    %1667 = vmatprep.subr.mxu0 0.0
    %1668 = vmatpush1.msra.mxu0 0.0
    %1669 = vmatprep.subr.mxu0 0.0
    %1670 = vmatpush1.msra.mxu0 0.0
    %1671 = vmatprep.subr.mxu0 0.0
    %1672 = vmatpush1.msra.mxu0 0.0
    %1673 = vmatprep.subr.mxu0 0.0
    %1674 = vmatpush1.msra.mxu0 0.0
    %1675 = vmatprep.subr.mxu0 0.0
    %1676 = vmatpush1.msra.mxu0 0.0
    %1677 = vmatprep.subr.mxu0 0.0
    %1678 = vmatpush1.msra.mxu0 0.0
    %1679 = vmatprep.subr.mxu0 0.0
    %1680 = vmatpush1.msra.mxu0 0.0
    %1681 = vmatprep.subr.mxu0 0.0
    %1682 = vmatpush1.msra.mxu0 0.0
    %1683 = vmatprep.subr.mxu0 0.0
    %1684 = vmatpush1.msra.mxu0 %v1660
    %1685 = vmatprep.subr.mxu0 0.0
    %1686 = vmatpush1.msra.mxu0 %v1659
    %1687 = vmatprep.subr.mxu0 0.0
    %1688 = vmatpush1.msra.mxu0 %v1658
    %1689 = vmatprep.subr.mxu0 0.0
    %1690 = vmatpush1.msra.mxu0 %v1657
    %1691 = vmatprep.subr.mxu0 0.0
    %1692 = vmatpush1.msra.mxu0 %v1656
    %1693 = vmatprep.subr.mxu0 0.0
    %1694 = vmatpush1.msra.mxu0 %v1655
    %1695 = vmatprep.subr.mxu0 0.0
    %1696 = vmatpush1.msra.mxu0 %v1654
    %1697 = vmatprep.subr.mxu0 0.0
    %1698 = vmatpush1.msra.mxu0 %v1653
    %1699 = vmatprep.subr.mxu0 0.0
    %1700 = vmatpush2.msra.mxu0 0.0
    %1701 = vmatprep.subr.mxu0 0.0
    %1702 = vmatpush2.msra.mxu0 0.0
    %1703 = vmatprep.subr.mxu0 0.0
    %1704 = vmatpush2.msra.mxu0 0.0
    %1705 = vmatprep.subr.mxu0 0.0
    %1706 = vmatpush2.msra.mxu0 0.0
    %1707 = vmatprep.subr.mxu0 0.0
    %1708 = vmatpush2.msra.mxu0 0.0
    %1709 = vmatprep.subr.mxu0 0.0
    %1710 = vmatpush2.msra.mxu0 0.0
    %1711 = vmatprep.subr.mxu0 0.0
    %1712 = vmatpush2.msra.mxu0 0.0
    %1713 = vmatprep.subr.mxu0 0.0
    %1714 = vmatpush2.msra.mxu0 0.0
    %1715 = vmatprep.subr.mxu0 0.0
    %1716 = vmatpush2.msra.mxu0 0.0
    %1717 = vmatprep.subr.mxu0 0.0
    %1718 = vmatpush2.msra.mxu0 0.0
    %1719 = vmatprep.subr.mxu0 0.0
    %1720 = vmatpush2.msra.mxu0 0.0
    %1721 = vmatprep.subr.mxu0 0.0
    %1722 = vmatpush2.msra.mxu0 0.0
    %1723 = vmatprep.subr.mxu0 0.0
    %1724 = vmatpush2.msra.mxu0 0.0
    %1725 = vmatprep.subr.mxu0 0.0
    %1726 = vmatpush2.msra.mxu0 0.0
    %1727 = vmatprep.subr.mxu0 0.0
    %1728 = vmatpush2.msra.mxu0 0.0
    %1729 = vmatprep.subr.mxu0 0.0
    %1730 = vmatpush2.msra.mxu0 0.0
    %1731 = vmatprep.mubr.f32.mxu0 0.0
    %1732 = vmatmul.mubr.f32.gmra.mxu0 %v1662
    %v1733 = vpop.f32.mrf.mxu0
    %v1734 = vadd.f32 0.0, %v1733
    %v1735 = vpop.f32.mrf.mxu0
    %1736 = vmatprep.mubr.f32.mxu0 0.0
    %1737 = vmatmul.mubr.f32.gmra.mxu0 %v1665
    %v1738 = vpop.f32.mrf.mxu0
    %v1739 = vadd.f32 0.0, %v1738
    %v1740 = vpop.f32.mrf.mxu0
    %1741 = vdwg.mxu0
    %v1742 = vlaneseq
    %v1743 = vshrl.u32 %v1742, 7
    %v1744 = vsub.s32 4, %v1743
    %v1745 = vrot.slane %v30, %v1744
    %v1746 = vadd.f32 %v1734, %v1745
    %v1747 = vadd.f32 %v1739, %v1745
    %v1748 = vmax.f32 %v1746, 0.0
    %v1749 = vmax.f32 %v1747, 0.0
    %vm1750 = vcmp.ne.f32.partialorder %v1746, %v1746
    %vm1751 = vcmp.ne.f32.partialorder %v1747, %v1747
    %v1752 = vadd.f32 %v1746, 0.0
    %v1753 = vadd.f32 %v1747, 0.0
    %v1754 = vand.u32 2147483647, %v1746
    %v1755 = vand.u32 2147483647, %v1747
    %v1756 = vsub.f32 0.0, %v1754
    %v1757 = vsub.f32 0.0, %v1755
    %v1758 = vmul.f32 %v1756, 1.442695
    %v1759 = vpow.pop %v1758
    %v1760 = vmul.f32 %v1757, 1.442695
    %v1761 = vpow.pop %v1760
    %v1762 = vadd.f32 %v1759, 1.0
    %v1763 = vlog2.pop %v1762
    %v1764 = vmul.f32 %v1763, 0.6931472
    %v1765 = vmul.f32 -0.5, %v1759
    %v1766 = vadd.f32 %v1765, 1.0
    %v1767 = vmul.f32 %v1766, %v1759
    %v1768 = vand.u32 2147483647, %v1759
    %vm1769 = vcmp.lt.f32.partialorder %v1768, 0.0004427343
    %v1770 = vsel %vm1769, %v1767, %v1764
    %v1771 = vadd.f32 %v1761, 1.0
    %v1772 = vlog2.pop %v1771
    %v1773 = vmul.f32 %v1772, 0.6931472
    %v1774 = vmul.f32 -0.5, %v1761
    %v1775 = vadd.f32 %v1774, 1.0
    %v1776 = vmul.f32 %v1775, %v1761
    %v1777 = vand.u32 2147483647, %v1761
    %vm1778 = vcmp.lt.f32.partialorder %v1777, 0.0004427343
    %v1779 = vsel %vm1778, %v1776, %v1773
    %v1780 = vadd.f32 %v1748, %v1770
    %v1781 = vadd.f32 %v1749, %v1779
    %v1782 = vsel %vm1750, %v1752, %v1780
    %v1783 = vsel %vm1751, %v1753, %v1781
    %s1784 = scalar_lea.vmem %s5, 16
    %v1785 = vld [vmem:[%s1784] sm:$0xff]
    %v1786 = vld [vmem:[%s1784 + $0x8] sm:$0xff]
    %v1789 = vcombine.high %v1782, %v1782
    %v1791 = vunpack.c.l.s4 1966171168
    %v1792 = vunpack.c.0.s8 %v1791
    %v1793 = vlaneseq
    %v1794 = vshrl.u32 %v1793, 7
    %v1795 = vsub.s32 %v1792, %v1794
    %v1796 = vrot.slane %v1782, %v1795
    %v1798 = vunpack.c.l.s4 1966171168
    %v1799 = vunpack.c.0.s8 %v1798
    %v1800 = vlaneseq
    %v1801 = vshrl.u32 %v1800, 7
    %v1802 = vsub.s32 %v1799, %v1801
    %v1803 = vrot.slane %v1789, %v1802
    %v1804 = vcombine.high %v1796, %v1796
    %v1805 = vcombine.high %v1803, %v1803
    %v1807 = vunpack.c.l.s4 1966171168
    %v1808 = vunpack.c.0.s8 %v1807
    %v1809 = vlaneseq
    %v1810 = vshrl.u32 %v1809, 7
    %v1811 = vsub.s32 %v1808, %v1810
    %v1812 = vrot.slane %v1796, %v1811
    %v1814 = vunpack.c.l.s4 1966171168
    %v1815 = vunpack.c.0.s8 %v1814
    %v1816 = vlaneseq
    %v1817 = vshrl.u32 %v1816, 7
    %v1818 = vsub.s32 %v1815, %v1817
    %v1819 = vrot.slane %v1803, %v1818
    %v1821 = vunpack.c.l.s4 1966171168
    %v1822 = vunpack.c.0.s8 %v1821
    %v1823 = vlaneseq
    %v1824 = vshrl.u32 %v1823, 7
    %v1825 = vsub.s32 %v1822, %v1824
    %v1826 = vrot.slane %v1804, %v1825
    %v1828 = vunpack.c.l.s4 1966171168
    %v1829 = vunpack.c.0.s8 %v1828
    %v1830 = vlaneseq
    %v1831 = vshrl.u32 %v1830, 7
    %v1832 = vsub.s32 %v1829, %v1831
    %v1833 = vrot.slane %v1805, %v1832
    %v1834 = vcombine.high %v1812, %v1812
    %v1835 = vcombine.high %v1819, %v1819
    %v1836 = vcombine.high %v1826, %v1826
    %v1837 = vcombine.high %v1833, %v1833
    %v1838 = vcombine.high %v1783, %v1783
    %v1840 = vunpack.c.l.s4 1966171168
    %v1841 = vunpack.c.0.s8 %v1840
    %v1842 = vlaneseq
    %v1843 = vshrl.u32 %v1842, 7
    %v1844 = vsub.s32 %v1841, %v1843
    %v1845 = vrot.slane %v1783, %v1844
    %v1847 = vunpack.c.l.s4 1966171168
    %v1848 = vunpack.c.0.s8 %v1847
    %v1849 = vlaneseq
    %v1850 = vshrl.u32 %v1849, 7
    %v1851 = vsub.s32 %v1848, %v1850
    %v1852 = vrot.slane %v1838, %v1851
    %v1853 = vcombine.high %v1845, %v1845
    %v1854 = vcombine.high %v1852, %v1852
    %v1856 = vunpack.c.l.s4 1966171168
    %v1857 = vunpack.c.0.s8 %v1856
    %v1858 = vlaneseq
    %v1859 = vshrl.u32 %v1858, 7
    %v1860 = vsub.s32 %v1857, %v1859
    %v1861 = vrot.slane %v1845, %v1860
    %v1863 = vunpack.c.l.s4 1966171168
    %v1864 = vunpack.c.0.s8 %v1863
    %v1865 = vlaneseq
    %v1866 = vshrl.u32 %v1865, 7
    %v1867 = vsub.s32 %v1864, %v1866
    %v1868 = vrot.slane %v1852, %v1867
    %v1870 = vunpack.c.l.s4 1966171168
    %v1871 = vunpack.c.0.s8 %v1870
    %v1872 = vlaneseq
    %v1873 = vshrl.u32 %v1872, 7
    %v1874 = vsub.s32 %v1871, %v1873
    %v1875 = vrot.slane %v1853, %v1874
    %v1877 = vunpack.c.l.s4 1966171168
    %v1878 = vunpack.c.0.s8 %v1877
    %v1879 = vlaneseq
    %v1880 = vshrl.u32 %v1879, 7
    %v1881 = vsub.s32 %v1878, %v1880
    %v1882 = vrot.slane %v1854, %v1881
    %v1883 = vcombine.high %v1861, %v1861
    %v1884 = vcombine.high %v1868, %v1868
    %v1885 = vcombine.high %v1875, %v1875
    %v1886 = vcombine.high %v1882, %v1882
    %v1887 = vlaneseq
    %v1888 = vshrl.u32 %v1887, 7
    %v1889 = vsub.s32 0, %v1888
    %v1890 = vrot.slane %v1812, %v1889
    %v1891 = vlaneseq
    %v1892 = vshrl.u32 %v1891, 7
    %v1893 = vsub.s32 0, %v1892
    %v1894 = vrot.slane %v1826, %v1893
    %v1895 = vlaneseq
    %v1896 = vshrl.u32 %v1895, 7
    %v1897 = vsub.s32 0, %v1896
    %v1898 = vrot.slane %v1834, %v1897
    %v1899 = vlaneseq
    %v1900 = vshrl.u32 %v1899, 7
    %v1901 = vsub.s32 0, %v1900
    %v1902 = vrot.slane %v1836, %v1901
    %v1903 = vlaneseq
    %v1904 = vshrl.u32 %v1903, 7
    %v1905 = vsub.s32 0, %v1904
    %v1906 = vrot.slane %v1819, %v1905
    %v1907 = vlaneseq
    %v1908 = vshrl.u32 %v1907, 7
    %v1909 = vsub.s32 0, %v1908
    %v1910 = vrot.slane %v1833, %v1909
    %v1911 = vlaneseq
    %v1912 = vshrl.u32 %v1911, 7
    %v1913 = vsub.s32 0, %v1912
    %v1914 = vrot.slane %v1835, %v1913
    %v1915 = vlaneseq
    %v1916 = vshrl.u32 %v1915, 7
    %v1917 = vsub.s32 0, %v1916
    %v1918 = vrot.slane %v1837, %v1917
    %v1919 = vlaneseq
    %v1920 = vshrl.u32 %v1919, 7
    %v1921 = vsub.s32 0, %v1920
    %v1922 = vrot.slane %v1861, %v1921
    %v1923 = vlaneseq
    %v1924 = vshrl.u32 %v1923, 7
    %v1925 = vsub.s32 0, %v1924
    %v1926 = vrot.slane %v1875, %v1925
    %v1927 = vlaneseq
    %v1928 = vshrl.u32 %v1927, 7
    %v1929 = vsub.s32 0, %v1928
    %v1930 = vrot.slane %v1883, %v1929
    %v1931 = vlaneseq
    %v1932 = vshrl.u32 %v1931, 7
    %v1933 = vsub.s32 0, %v1932
    %v1934 = vrot.slane %v1885, %v1933
    %v1935 = vlaneseq
    %v1936 = vshrl.u32 %v1935, 7
    %v1937 = vsub.s32 0, %v1936
    %v1938 = vrot.slane %v1868, %v1937
    %v1939 = vlaneseq
    %v1940 = vshrl.u32 %v1939, 7
    %v1941 = vsub.s32 0, %v1940
    %v1942 = vrot.slane %v1882, %v1941
    %v1943 = vlaneseq
    %v1944 = vshrl.u32 %v1943, 7
    %v1945 = vsub.s32 0, %v1944
    %v1946 = vrot.slane %v1884, %v1945
    %v1947 = vlaneseq
    %v1948 = vshrl.u32 %v1947, 7
    %v1949 = vsub.s32 0, %v1948
    %v1950 = vrot.slane %v1886, %v1949
    %v1967 = vmul.f32 %v1890, %v1785
    %v1968 = vmul.f32 %v1890, %v1786
    %v1969 = vmul.f32 %v1894, %v1785
    %v1970 = vmul.f32 %v1894, %v1786
    %v1971 = vmul.f32 %v1898, %v1785
    %v1972 = vmul.f32 %v1898, %v1786
    %v1973 = vmul.f32 %v1902, %v1785
    %v1974 = vmul.f32 %v1902, %v1786
    %v1975 = vmul.f32 %v1906, %v1785
    %v1976 = vmul.f32 %v1906, %v1786
    %v1977 = vmul.f32 %v1910, %v1785
    %v1978 = vmul.f32 %v1910, %v1786
    %v1979 = vmul.f32 %v1914, %v1785
    %v1980 = vmul.f32 %v1914, %v1786
    %v1981 = vmul.f32 %v1918, %v1785
    %v1982 = vmul.f32 %v1918, %v1786
    %v1983 = vmul.f32 %v1922, %v1785
    %v1984 = vmul.f32 %v1922, %v1786
    %v1985 = vmul.f32 %v1926, %v1785
    %v1986 = vmul.f32 %v1926, %v1786
    %v1987 = vmul.f32 %v1930, %v1785
    %v1988 = vmul.f32 %v1930, %v1786
    %v1989 = vmul.f32 %v1934, %v1785
    %v1990 = vmul.f32 %v1934, %v1786
    %v1991 = vmul.f32 %v1938, %v1785
    %v1992 = vmul.f32 %v1938, %v1786
    %v1993 = vmul.f32 %v1942, %v1785
    %v1994 = vmul.f32 %v1942, %v1786
    %v1995 = vmul.f32 %v1946, %v1785
    %v1996 = vmul.f32 %v1946, %v1786
    %v1997 = vmul.f32 %v1950, %v1785
    %v1998 = vmul.f32 %v1950, %v1786
    %v1999 = vmul.f32 %v1967, 1.442695
    %v2000 = vpow.pop %v1999
    %v2001 = vmul.f32 %v1968, 1.442695
    %v2002 = vpow.pop %v2001
    %v2003 = vmul.f32 %v1969, 1.442695
    %v2004 = vpow.pop %v2003
    %v2005 = vmul.f32 %v1970, 1.442695
    %v2006 = vpow.pop %v2005
    %v2007 = vmul.f32 %v1971, 1.442695
    %v2008 = vpow.pop %v2007
    %v2009 = vmul.f32 %v1972, 1.442695
    %v2010 = vpow.pop %v2009
    %v2011 = vmul.f32 %v1973, 1.442695
    %v2012 = vpow.pop %v2011
    %v2013 = vmul.f32 %v1974, 1.442695
    %v2014 = vpow.pop %v2013
    %v2015 = vmul.f32 %v1975, 1.442695
    %v2016 = vpow.pop %v2015
    %v2017 = vmul.f32 %v1976, 1.442695
    %v2018 = vpow.pop %v2017
    %v2019 = vmul.f32 %v1977, 1.442695
    %v2020 = vpow.pop %v2019
    %v2021 = vmul.f32 %v1978, 1.442695
    %v2022 = vpow.pop %v2021
    %v2023 = vmul.f32 %v1979, 1.442695
    %v2024 = vpow.pop %v2023
    %v2025 = vmul.f32 %v1980, 1.442695
    %v2026 = vpow.pop %v2025
    %v2027 = vmul.f32 %v1981, 1.442695
    %v2028 = vpow.pop %v2027
    %v2029 = vmul.f32 %v1982, 1.442695
    %v2030 = vpow.pop %v2029
    %v2031 = vmul.f32 %v1983, 1.442695
    %v2032 = vpow.pop %v2031
    %v2033 = vmul.f32 %v1984, 1.442695
    %v2034 = vpow.pop %v2033
    %v2035 = vmul.f32 %v1985, 1.442695
    %v2036 = vpow.pop %v2035
    %v2037 = vmul.f32 %v1986, 1.442695
    %v2038 = vpow.pop %v2037
    %v2039 = vmul.f32 %v1987, 1.442695
    %v2040 = vpow.pop %v2039
    %v2041 = vmul.f32 %v1988, 1.442695
    %v2042 = vpow.pop %v2041
    %v2043 = vmul.f32 %v1989, 1.442695
    %v2044 = vpow.pop %v2043
    %v2045 = vmul.f32 %v1990, 1.442695
    %v2046 = vpow.pop %v2045
    %v2047 = vmul.f32 %v1991, 1.442695
    %v2048 = vpow.pop %v2047
    %v2049 = vmul.f32 %v1992, 1.442695
    %v2050 = vpow.pop %v2049
    %v2051 = vmul.f32 %v1993, 1.442695
    %v2052 = vpow.pop %v2051
    %v2053 = vmul.f32 %v1994, 1.442695
    %v2054 = vpow.pop %v2053
    %v2055 = vmul.f32 %v1995, 1.442695
    %v2056 = vpow.pop %v2055
    %v2057 = vmul.f32 %v1996, 1.442695
    %v2058 = vpow.pop %v2057
    %v2059 = vmul.f32 %v1997, 1.442695
    %v2060 = vpow.pop %v2059
    %v2061 = vmul.f32 %v1998, 1.442695
    %v2062 = vpow.pop %v2061
    %v2063 = vlaneseq
    %v2064 = vshrl.u32 %v2063, 7
    %v2065 = vsub.s32 0, %v2064
    %v2066 = vrot.slane %v1734, %v2065
    %s2068 = sor.u32 256, 64
    %2069 = vbcast.lane.b32.xlu0 %v2066, %s2068
    %v2070 = vpop.permute.xlu0 %2069
    %s2072 = sor.u32 256, 72
    %2073 = vbcast.lane.b32.xlu0 %v2066, %s2072
    %v2074 = vpop.permute.xlu0 %2073
    %v2075 = vlaneseq
    %v2076 = vshrl.u32 %v2075, 7
    %v2077 = vsub.s32 1, %v2076
    %v2078 = vrot.slane %v1734, %v2077
    %s2080 = sor.u32 256, 64
    %2081 = vbcast.lane.b32.xlu0 %v2078, %s2080
    %v2082 = vpop.permute.xlu0 %2081
    %s2084 = sor.u32 256, 72
    %2085 = vbcast.lane.b32.xlu0 %v2078, %s2084
    %v2086 = vpop.permute.xlu0 %2085
    %v2087 = vlaneseq
    %v2088 = vshrl.u32 %v2087, 7
    %v2089 = vsub.s32 2, %v2088
    %v2090 = vrot.slane %v1734, %v2089
    %s2092 = sor.u32 256, 64
    %2093 = vbcast.lane.b32.xlu0 %v2090, %s2092
    %v2094 = vpop.permute.xlu0 %2093
    %s2096 = sor.u32 256, 72
    %2097 = vbcast.lane.b32.xlu0 %v2090, %s2096
    %v2098 = vpop.permute.xlu0 %2097
    %v2099 = vlaneseq
    %v2100 = vshrl.u32 %v2099, 7
    %v2101 = vsub.s32 3, %v2100
    %v2102 = vrot.slane %v1734, %v2101
    %s2104 = sor.u32 256, 64
    %2105 = vbcast.lane.b32.xlu0 %v2102, %s2104
    %v2106 = vpop.permute.xlu0 %2105
    %s2108 = sor.u32 256, 72
    %2109 = vbcast.lane.b32.xlu0 %v2102, %s2108
    %v2110 = vpop.permute.xlu0 %2109
    %v2111 = vlaneseq
    %v2112 = vshrl.u32 %v2111, 7
    %v2113 = vsub.s32 4, %v2112
    %v2114 = vrot.slane %v1734, %v2113
    %s2116 = sor.u32 256, 64
    %2117 = vbcast.lane.b32.xlu0 %v2114, %s2116
    %v2118 = vpop.permute.xlu0 %2117
    %s2120 = sor.u32 256, 72
    %2121 = vbcast.lane.b32.xlu0 %v2114, %s2120
    %v2122 = vpop.permute.xlu0 %2121
    %v2123 = vlaneseq
    %v2124 = vshrl.u32 %v2123, 7
    %v2125 = vsub.s32 5, %v2124
    %v2126 = vrot.slane %v1734, %v2125
    %s2128 = sor.u32 256, 64
    %2129 = vbcast.lane.b32.xlu0 %v2126, %s2128
    %v2130 = vpop.permute.xlu0 %2129
    %s2132 = sor.u32 256, 72
    %2133 = vbcast.lane.b32.xlu0 %v2126, %s2132
    %v2134 = vpop.permute.xlu0 %2133
    %v2135 = vlaneseq
    %v2136 = vshrl.u32 %v2135, 7
    %v2137 = vsub.s32 6, %v2136
    %v2138 = vrot.slane %v1734, %v2137
    %s2140 = sor.u32 256, 64
    %2141 = vbcast.lane.b32.xlu0 %v2138, %s2140
    %v2142 = vpop.permute.xlu0 %2141
    %s2144 = sor.u32 256, 72
    %2145 = vbcast.lane.b32.xlu0 %v2138, %s2144
    %v2146 = vpop.permute.xlu0 %2145
    %v2147 = vlaneseq
    %v2148 = vshrl.u32 %v2147, 7
    %v2149 = vsub.s32 7, %v2148
    %v2150 = vrot.slane %v1734, %v2149
    %s2152 = sor.u32 256, 64
    %2153 = vbcast.lane.b32.xlu0 %v2150, %s2152
    %v2154 = vpop.permute.xlu0 %2153
    %s2156 = sor.u32 256, 72
    %2157 = vbcast.lane.b32.xlu0 %v2150, %s2156
    %v2158 = vpop.permute.xlu0 %2157
    %v2159 = vlaneseq
    %v2160 = vshrl.u32 %v2159, 7
    %v2161 = vsub.s32 0, %v2160
    %v2162 = vrot.slane %v1739, %v2161
    %s2164 = sor.u32 256, 64
    %2165 = vbcast.lane.b32.xlu0 %v2162, %s2164
    %v2166 = vpop.permute.xlu0 %2165
    %s2168 = sor.u32 256, 72
    %2169 = vbcast.lane.b32.xlu0 %v2162, %s2168
    %v2170 = vpop.permute.xlu0 %2169
    %v2171 = vlaneseq
    %v2172 = vshrl.u32 %v2171, 7
    %v2173 = vsub.s32 1, %v2172
    %v2174 = vrot.slane %v1739, %v2173
    %s2176 = sor.u32 256, 64
    %2177 = vbcast.lane.b32.xlu0 %v2174, %s2176
    %v2178 = vpop.permute.xlu0 %2177
    %s2180 = sor.u32 256, 72
    %2181 = vbcast.lane.b32.xlu0 %v2174, %s2180
    %v2182 = vpop.permute.xlu0 %2181
    %v2183 = vlaneseq
    %v2184 = vshrl.u32 %v2183, 7
    %v2185 = vsub.s32 2, %v2184
    %v2186 = vrot.slane %v1739, %v2185
    %s2188 = sor.u32 256, 64
    %2189 = vbcast.lane.b32.xlu0 %v2186, %s2188
    %v2190 = vpop.permute.xlu0 %2189
    %s2192 = sor.u32 256, 72
    %2193 = vbcast.lane.b32.xlu0 %v2186, %s2192
    %v2194 = vpop.permute.xlu0 %2193
    %v2195 = vlaneseq
    %v2196 = vshrl.u32 %v2195, 7
    %v2197 = vsub.s32 3, %v2196
    %v2198 = vrot.slane %v1739, %v2197
    %s2200 = sor.u32 256, 64
    %2201 = vbcast.lane.b32.xlu0 %v2198, %s2200
    %v2202 = vpop.permute.xlu0 %2201
    %s2204 = sor.u32 256, 72
    %2205 = vbcast.lane.b32.xlu0 %v2198, %s2204
    %v2206 = vpop.permute.xlu0 %2205
    %v2207 = vlaneseq
    %v2208 = vshrl.u32 %v2207, 7
    %v2209 = vsub.s32 4, %v2208
    %v2210 = vrot.slane %v1739, %v2209
    %s2212 = sor.u32 256, 64
    %2213 = vbcast.lane.b32.xlu0 %v2210, %s2212
    %v2214 = vpop.permute.xlu0 %2213
    %s2216 = sor.u32 256, 72
    %2217 = vbcast.lane.b32.xlu0 %v2210, %s2216
    %v2218 = vpop.permute.xlu0 %2217
    %v2219 = vlaneseq
    %v2220 = vshrl.u32 %v2219, 7
    %v2221 = vsub.s32 5, %v2220
    %v2222 = vrot.slane %v1739, %v2221
    %s2224 = sor.u32 256, 64
    %2225 = vbcast.lane.b32.xlu0 %v2222, %s2224
    %v2226 = vpop.permute.xlu0 %2225
    %s2228 = sor.u32 256, 72
    %2229 = vbcast.lane.b32.xlu0 %v2222, %s2228
    %v2230 = vpop.permute.xlu0 %2229
    %v2231 = vlaneseq
    %v2232 = vshrl.u32 %v2231, 7
    %v2233 = vsub.s32 6, %v2232
    %v2234 = vrot.slane %v1739, %v2233
    %s2236 = sor.u32 256, 64
    %2237 = vbcast.lane.b32.xlu0 %v2234, %s2236
    %v2238 = vpop.permute.xlu0 %2237
    %s2240 = sor.u32 256, 72
    %2241 = vbcast.lane.b32.xlu0 %v2234, %s2240
    %v2242 = vpop.permute.xlu0 %2241
    %v2243 = vlaneseq
    %v2244 = vshrl.u32 %v2243, 7
    %v2245 = vsub.s32 7, %v2244
    %v2246 = vrot.slane %v1739, %v2245
    %s2248 = sor.u32 256, 64
    %2249 = vbcast.lane.b32.xlu0 %v2246, %s2248
    %v2250 = vpop.permute.xlu0 %2249
    %s2252 = sor.u32 256, 72
    %2253 = vbcast.lane.b32.xlu0 %v2246, %s2252
    %v2254 = vpop.permute.xlu0 %2253
    %v2255 = vmul.f32 %v1782, %v1650
    %v2256 = vmul.f32 %v1783, %v1651
    %v2259 = vcombine.high %v2255, %v2255
    %v2261 = vunpack.c.l.s4 1966171168
    %v2262 = vunpack.c.0.s8 %v2261
    %v2263 = vlaneseq
    %v2264 = vshrl.u32 %v2263, 7
    %v2265 = vsub.s32 %v2262, %v2264
    %v2266 = vrot.slane %v2255, %v2265
    %v2268 = vunpack.c.l.s4 1966171168
    %v2269 = vunpack.c.0.s8 %v2268
    %v2270 = vlaneseq
    %v2271 = vshrl.u32 %v2270, 7
    %v2272 = vsub.s32 %v2269, %v2271
    %v2273 = vrot.slane %v2259, %v2272
    %v2274 = vcombine.high %v2266, %v2266
    %v2275 = vcombine.high %v2273, %v2273
    %v2277 = vunpack.c.l.s4 1966171168
    %v2278 = vunpack.c.0.s8 %v2277
    %v2279 = vlaneseq
    %v2280 = vshrl.u32 %v2279, 7
    %v2281 = vsub.s32 %v2278, %v2280
    %v2282 = vrot.slane %v2266, %v2281
    %v2284 = vunpack.c.l.s4 1966171168
    %v2285 = vunpack.c.0.s8 %v2284
    %v2286 = vlaneseq
    %v2287 = vshrl.u32 %v2286, 7
    %v2288 = vsub.s32 %v2285, %v2287
    %v2289 = vrot.slane %v2273, %v2288
    %v2291 = vunpack.c.l.s4 1966171168
    %v2292 = vunpack.c.0.s8 %v2291
    %v2293 = vlaneseq
    %v2294 = vshrl.u32 %v2293, 7
    %v2295 = vsub.s32 %v2292, %v2294
    %v2296 = vrot.slane %v2274, %v2295
    %v2298 = vunpack.c.l.s4 1966171168
    %v2299 = vunpack.c.0.s8 %v2298
    %v2300 = vlaneseq
    %v2301 = vshrl.u32 %v2300, 7
    %v2302 = vsub.s32 %v2299, %v2301
    %v2303 = vrot.slane %v2275, %v2302
    %v2304 = vcombine.high %v2282, %v2282
    %v2305 = vcombine.high %v2289, %v2289
    %v2306 = vcombine.high %v2296, %v2296
    %v2307 = vcombine.high %v2303, %v2303
    %v2308 = vcombine.high %v2256, %v2256
    %v2310 = vunpack.c.l.s4 1966171168
    %v2311 = vunpack.c.0.s8 %v2310
    %v2312 = vlaneseq
    %v2313 = vshrl.u32 %v2312, 7
    %v2314 = vsub.s32 %v2311, %v2313
    %v2315 = vrot.slane %v2256, %v2314
    %v2317 = vunpack.c.l.s4 1966171168
    %v2318 = vunpack.c.0.s8 %v2317
    %v2319 = vlaneseq
    %v2320 = vshrl.u32 %v2319, 7
    %v2321 = vsub.s32 %v2318, %v2320
    %v2322 = vrot.slane %v2308, %v2321
    %v2323 = vcombine.high %v2315, %v2315
    %v2324 = vcombine.high %v2322, %v2322
    %v2326 = vunpack.c.l.s4 1966171168
    %v2327 = vunpack.c.0.s8 %v2326
    %v2328 = vlaneseq
    %v2329 = vshrl.u32 %v2328, 7
    %v2330 = vsub.s32 %v2327, %v2329
    %v2331 = vrot.slane %v2315, %v2330
    %v2333 = vunpack.c.l.s4 1966171168
    %v2334 = vunpack.c.0.s8 %v2333
    %v2335 = vlaneseq
    %v2336 = vshrl.u32 %v2335, 7
    %v2337 = vsub.s32 %v2334, %v2336
    %v2338 = vrot.slane %v2322, %v2337
    %v2340 = vunpack.c.l.s4 1966171168
    %v2341 = vunpack.c.0.s8 %v2340
    %v2342 = vlaneseq
    %v2343 = vshrl.u32 %v2342, 7
    %v2344 = vsub.s32 %v2341, %v2343
    %v2345 = vrot.slane %v2323, %v2344
    %v2347 = vunpack.c.l.s4 1966171168
    %v2348 = vunpack.c.0.s8 %v2347
    %v2349 = vlaneseq
    %v2350 = vshrl.u32 %v2349, 7
    %v2351 = vsub.s32 %v2348, %v2350
    %v2352 = vrot.slane %v2324, %v2351
    %v2353 = vcombine.high %v2331, %v2331
    %v2354 = vcombine.high %v2338, %v2338
    %v2355 = vcombine.high %v2345, %v2345
    %v2356 = vcombine.high %v2352, %v2352
    %v2357 = vlaneseq
    %v2358 = vshrl.u32 %v2357, 7
    %v2359 = vsub.s32 0, %v2358
    %v2360 = vrot.slane %v2282, %v2359
    %v2361 = vlaneseq
    %v2362 = vshrl.u32 %v2361, 7
    %v2363 = vsub.s32 0, %v2362
    %v2364 = vrot.slane %v2296, %v2363
    %v2365 = vlaneseq
    %v2366 = vshrl.u32 %v2365, 7
    %v2367 = vsub.s32 0, %v2366
    %v2368 = vrot.slane %v2304, %v2367
    %v2369 = vlaneseq
    %v2370 = vshrl.u32 %v2369, 7
    %v2371 = vsub.s32 0, %v2370
    %v2372 = vrot.slane %v2306, %v2371
    %v2373 = vlaneseq
    %v2374 = vshrl.u32 %v2373, 7
    %v2375 = vsub.s32 0, %v2374
    %v2376 = vrot.slane %v2289, %v2375
    %v2377 = vlaneseq
    %v2378 = vshrl.u32 %v2377, 7
    %v2379 = vsub.s32 0, %v2378
    %v2380 = vrot.slane %v2303, %v2379
    %v2381 = vlaneseq
    %v2382 = vshrl.u32 %v2381, 7
    %v2383 = vsub.s32 0, %v2382
    %v2384 = vrot.slane %v2305, %v2383
    %v2385 = vlaneseq
    %v2386 = vshrl.u32 %v2385, 7
    %v2387 = vsub.s32 0, %v2386
    %v2388 = vrot.slane %v2307, %v2387
    %v2389 = vlaneseq
    %v2390 = vshrl.u32 %v2389, 7
    %v2391 = vsub.s32 0, %v2390
    %v2392 = vrot.slane %v2331, %v2391
    %v2393 = vlaneseq
    %v2394 = vshrl.u32 %v2393, 7
    %v2395 = vsub.s32 0, %v2394
    %v2396 = vrot.slane %v2345, %v2395
    %v2397 = vlaneseq
    %v2398 = vshrl.u32 %v2397, 7
    %v2399 = vsub.s32 0, %v2398
    %v2400 = vrot.slane %v2353, %v2399
    %v2401 = vlaneseq
    %v2402 = vshrl.u32 %v2401, 7
    %v2403 = vsub.s32 0, %v2402
    %v2404 = vrot.slane %v2355, %v2403
    %v2405 = vlaneseq
    %v2406 = vshrl.u32 %v2405, 7
    %v2407 = vsub.s32 0, %v2406
    %v2408 = vrot.slane %v2338, %v2407
    %v2409 = vlaneseq
    %v2410 = vshrl.u32 %v2409, 7
    %v2411 = vsub.s32 0, %v2410
    %v2412 = vrot.slane %v2352, %v2411
    %v2413 = vlaneseq
    %v2414 = vshrl.u32 %v2413, 7
    %v2415 = vsub.s32 0, %v2414
    %v2416 = vrot.slane %v2354, %v2415
    %v2417 = vlaneseq
    %v2418 = vshrl.u32 %v2417, 7
    %v2419 = vsub.s32 0, %v2418
    %v2420 = vrot.slane %v2356, %v2419
    %v2437 = vmul.f32 %v2070, %v2360
    %v2438 = vmul.f32 %v2074, %v2360
    %v2439 = vmul.f32 %v2082, %v2364
    %v2440 = vmul.f32 %v2086, %v2364
    %v2441 = vmul.f32 %v2094, %v2368
    %v2442 = vmul.f32 %v2098, %v2368
    %v2443 = vmul.f32 %v2106, %v2372
    %v2444 = vmul.f32 %v2110, %v2372
    %v2445 = vmul.f32 %v2118, %v2376
    %v2446 = vmul.f32 %v2122, %v2376
    %v2447 = vmul.f32 %v2130, %v2380
    %v2448 = vmul.f32 %v2134, %v2380
    %v2449 = vmul.f32 %v2142, %v2384
    %v2450 = vmul.f32 %v2146, %v2384
    %v2451 = vmul.f32 %v2154, %v2388
    %v2452 = vmul.f32 %v2158, %v2388
    %v2453 = vmul.f32 %v2166, %v2392
    %v2454 = vmul.f32 %v2170, %v2392
    %v2455 = vmul.f32 %v2178, %v2396
    %v2456 = vmul.f32 %v2182, %v2396
    %v2457 = vmul.f32 %v2190, %v2400
    %v2458 = vmul.f32 %v2194, %v2400
    %v2459 = vmul.f32 %v2202, %v2404
    %v2460 = vmul.f32 %v2206, %v2404
    %v2461 = vmul.f32 %v2214, %v2408
    %v2462 = vmul.f32 %v2218, %v2408
    %v2463 = vmul.f32 %v2226, %v2412
    %v2464 = vmul.f32 %v2230, %v2412
    %v2465 = vmul.f32 %v2238, %v2416
    %v2466 = vmul.f32 %v2242, %v2416
    %v2467 = vmul.f32 %v2250, %v2420
    %v2468 = vmul.f32 %v2254, %v2420
    %s2470 = sor.u32 256, 80
    %2471 = vbcast.lane.b32.xlu0 %v2150, %s2470
    %v2472 = vpop.permute.xlu0 %2471
    %s2474 = sor.u32 256, 88
    %2475 = vbcast.lane.b32.xlu0 %v2150, %s2474
    %v2476 = vpop.permute.xlu0 %2475
    %s2478 = sor.u32 256, 80
    %2479 = vbcast.lane.b32.xlu0 %v2246, %s2478
    %v2480 = vpop.permute.xlu0 %2479
    %s2482 = sor.u32 256, 88
    %2483 = vbcast.lane.b32.xlu0 %v2246, %s2482
    %v2484 = vpop.permute.xlu0 %2483
    %v2485 = vmul.f32 %v2000, 0.0
    %v2486 = vmul.f32 %v2002, 0.0
    %v2487 = vmul.f32 %v2032, 0.0
    %v2488 = vmul.f32 %v2034, 0.0
    %v2489 = vadd.f32 %v2485, %v2437
    %v2490 = vadd.f32 %v2486, %v2438
    %v2491 = vadd.f32 %v2487, %v2453
    %v2492 = vadd.f32 %v2488, %v2454
    %v2493 = vmul.f32 %v2004, %v2489
    %v2494 = vmul.f32 %v2006, %v2490
    %v2495 = vmul.f32 %v2036, %v2491
    %v2496 = vmul.f32 %v2038, %v2492
    %v2497 = vadd.f32 %v2493, %v2439
    %v2498 = vadd.f32 %v2494, %v2440
    %v2499 = vadd.f32 %v2495, %v2455
    %v2500 = vadd.f32 %v2496, %v2456
    %v2501 = vmul.f32 %v2008, %v2497
    %v2502 = vmul.f32 %v2010, %v2498
    %v2503 = vmul.f32 %v2040, %v2499
    %v2504 = vmul.f32 %v2042, %v2500
    %v2505 = vadd.f32 %v2501, %v2441
    %v2506 = vadd.f32 %v2502, %v2442
    %v2507 = vadd.f32 %v2503, %v2457
    %v2508 = vadd.f32 %v2504, %v2458
    %v2509 = vmul.f32 %v2012, %v2505
    %v2510 = vmul.f32 %v2014, %v2506
    %v2511 = vmul.f32 %v2044, %v2507
    %v2512 = vmul.f32 %v2046, %v2508
    %v2513 = vadd.f32 %v2509, %v2443
    %v2514 = vadd.f32 %v2510, %v2444
    %v2515 = vadd.f32 %v2511, %v2459
    %v2516 = vadd.f32 %v2512, %v2460
    %v2517 = vmul.f32 %v2016, %v2513
    %v2518 = vmul.f32 %v2018, %v2514
    %v2519 = vmul.f32 %v2048, %v2515
    %v2520 = vmul.f32 %v2050, %v2516
    %v2521 = vadd.f32 %v2517, %v2445
    %v2522 = vadd.f32 %v2518, %v2446
    %v2523 = vadd.f32 %v2519, %v2461
    %v2524 = vadd.f32 %v2520, %v2462
    %v2525 = vmul.f32 %v2020, %v2521
    %v2526 = vmul.f32 %v2022, %v2522
    %v2527 = vmul.f32 %v2052, %v2523
    %v2528 = vmul.f32 %v2054, %v2524
    %v2529 = vadd.f32 %v2525, %v2447
    %v2530 = vadd.f32 %v2526, %v2448
    %v2531 = vadd.f32 %v2527, %v2463
    %v2532 = vadd.f32 %v2528, %v2464
    %v2533 = vmul.f32 %v2024, %v2529
    %v2534 = vmul.f32 %v2026, %v2530
    %v2535 = vmul.f32 %v2056, %v2531
    %v2536 = vmul.f32 %v2058, %v2532
    %v2537 = vadd.f32 %v2533, %v2449
    %v2538 = vadd.f32 %v2534, %v2450
    %v2539 = vadd.f32 %v2535, %v2465
    %v2540 = vadd.f32 %v2536, %v2466
    %v2541 = vmul.f32 %v2028, %v2537
    %v2542 = vmul.f32 %v2030, %v2538
    %v2543 = vmul.f32 %v2060, %v2539
    %v2544 = vmul.f32 %v2062, %v2540
    %v2545 = vadd.f32 %v2541, %v2451
    %v2546 = vadd.f32 %v2542, %v2452
    %v2547 = vadd.f32 %v2543, %v2467
    %v2548 = vadd.f32 %v2544, %v2468
    %v2549 = vmul.f32 %v2545, %v2472
    %v2550 = vmul.f32 %v2546, %v2476
    %v2551 = vmul.f32 %v2547, %v2480
    %v2552 = vmul.f32 %v2548, %v2484
    %v2553 = vsel %vm237, %v2549, 0.0
    %v2554 = vsel %vm237, %v2550, 0.0
    %v2555 = vadd.f32 %v2553, %v2554
    %v2556 = vrot.slane %v2555, 4
    %v2557 = vadd.f32 %v2555, %v2556
    %v2558 = vrot.slane %v2557, 2
    %v2559 = vadd.f32 %v2557, %v2558
    %v2560 = vrot.slane %v2559, 1
    %v2561 = vadd.f32 %v2559, %v2560
    %v2562 = vsel %vm237, %v2551, 0.0
    %v2563 = vsel %vm237, %v2552, 0.0
    %v2564 = vadd.f32 %v2562, %v2563
    %v2565 = vrot.slane %v2564, 4
    %v2566 = vadd.f32 %v2564, %v2565
    %v2567 = vrot.slane %v2566, 2
    %v2568 = vadd.f32 %v2566, %v2567
    %v2569 = vrot.slane %v2568, 1
    %v2570 = vadd.f32 %v2568, %v2569
    %v2571 = vlaneseq
    %v2572 = vshrl.u32 %v2571, 7
    %v2573 = vsub.s32 6, %v2572
    %v2574 = vrot.slane %v30, %v2573
    %v2575 = vrot.slane %v1650, 7
    %v2576 = vrot.slane %v1651, 6
    %vm2577 = vcmask 1041409
    %v2578 = vsel %vm2577, %v2576, %v2575
    %v2580 = vmul.f32 %v2574, %v2578
    %v2582 = vrot.slane %v2580, 1
    %v2585 = vadd.f32 %v2561, %v2580
    %v2586 = vadd.f32 %v2570, %v2582
    %v2587 = vxor.u32 %v1542, 2147483648
    %v2588 = vxor.u32 %v1547, 2147483648
    %v2589 = vmul.f32 %v2587, 1.442695
    %v2590 = vpow.pop %v2589
    %v2591 = vmul.f32 %v2588, 1.442695
    %v2592 = vpow.pop %v2591
    %v2593 = vadd.f32 %v2590, 1.0
    %v2594 = vadd.f32 %v2592, 1.0
    %v2595 = vrcp.pop %v2593
    %v2596 = vmul.f32 1.0, %v2595
    %v2597 = vrcp.pop %v2594
    %v2598 = vmul.f32 1.0, %v2597
    %v2599 = vmul.f32 %v1542, %v2596
    %v2600 = vmul.f32 %v1547, %v2598
    %v2603 = vrot.slane %v2599, 7
    %v2604 = vrot.slane %v2600, 7
    %2605 = vrot.lane.b32.xlu0 %v2603, 64
    %v2606 = vpop.permute.xlu0 %2605
    %2607 = vrot.lane.b32.xlu0 %v2604, 64
    %v2608 = vpop.permute.xlu0 %2607
    %v2611 = vmul.f32 %v2585, %v2606
    %v2612 = vmul.f32 %v2586, %v2608
    %v2613 = vld [vmem:[%s7] sm:$0xff]
    %v2614 = vld [vmem:[%s7 + $0x8] sm:$0xff]
    %v2615 = vld [vmem:[%s7 + $0x10] sm:$0xff]
    %v2616 = vld [vmem:[%s7 + $0x18] sm:$0xff]
    %v2617 = vld [vmem:[%s7 + $0x20] sm:$0xff]
    %v2618 = vld [vmem:[%s7 + $0x28] sm:$0xff]
    %v2619 = vld [vmem:[%s7 + $0x30] sm:$0xff]
    %v2620 = vld [vmem:[%s7 + $0x38] sm:$0xff]
    %v2621 = vlaneseq
    %v2622 = vshrl.u32 %v2621, 7
    %v2623 = vsub.s32 7, %v2622
    %v2624 = vrot.slane %v30, %v2623
    %v2627 = vrot.slane %v2612, 7
    %v2628 = vsel %vm2577, %v2627, %v2611
    %v2629 = vsel %vm237, %v2628, 0
    %2631 = vmatprep.subr.mxu0 0.0
    %2632 = vmatpush1.msra.mxu0 0.0
    %2633 = vmatprep.subr.mxu0 0.0
    %2634 = vmatpush1.msra.mxu0 0.0
    %2635 = vmatprep.subr.mxu0 0.0
    %2636 = vmatpush1.msra.mxu0 0.0
    %2637 = vmatprep.subr.mxu0 0.0
    %2638 = vmatpush1.msra.mxu0 0.0
    %2639 = vmatprep.subr.mxu0 0.0
    %2640 = vmatpush1.msra.mxu0 0.0
    %2641 = vmatprep.subr.mxu0 0.0
    %2642 = vmatpush1.msra.mxu0 0.0
    %2643 = vmatprep.subr.mxu0 0.0
    %2644 = vmatpush1.msra.mxu0 0.0
    %2645 = vmatprep.subr.mxu0 0.0
    %2646 = vmatpush1.msra.mxu0 0.0
    %2647 = vmatprep.subr.mxu0 0.0
    %2648 = vmatpush1.msra.mxu0 %v2620
    %2649 = vmatprep.subr.mxu0 0.0
    %2650 = vmatpush1.msra.mxu0 %v2619
    %2651 = vmatprep.subr.mxu0 0.0
    %2652 = vmatpush1.msra.mxu0 %v2618
    %2653 = vmatprep.subr.mxu0 0.0
    %2654 = vmatpush1.msra.mxu0 %v2617
    %2655 = vmatprep.subr.mxu0 0.0
    %2656 = vmatpush1.msra.mxu0 %v2616
    %2657 = vmatprep.subr.mxu0 0.0
    %2658 = vmatpush1.msra.mxu0 %v2615
    %2659 = vmatprep.subr.mxu0 0.0
    %2660 = vmatpush1.msra.mxu0 %v2614
    %2661 = vmatprep.subr.mxu0 0.0
    %2662 = vmatpush1.msra.mxu0 %v2613
    %2663 = vmatprep.subr.mxu0 0.0
    %2664 = vmatpush2.msra.mxu0 0.0
    %2665 = vmatprep.subr.mxu0 0.0
    %2666 = vmatpush2.msra.mxu0 0.0
    %2667 = vmatprep.subr.mxu0 0.0
    %2668 = vmatpush2.msra.mxu0 0.0
    %2669 = vmatprep.subr.mxu0 0.0
    %2670 = vmatpush2.msra.mxu0 0.0
    %2671 = vmatprep.subr.mxu0 0.0
    %2672 = vmatpush2.msra.mxu0 0.0
    %2673 = vmatprep.subr.mxu0 0.0
    %2674 = vmatpush2.msra.mxu0 0.0
    %2675 = vmatprep.subr.mxu0 0.0
    %2676 = vmatpush2.msra.mxu0 0.0
    %2677 = vmatprep.subr.mxu0 0.0
    %2678 = vmatpush2.msra.mxu0 0.0
    %2679 = vmatprep.subr.mxu0 0.0
    %2680 = vmatpush2.msra.mxu0 0.0
    %2681 = vmatprep.subr.mxu0 0.0
    %2682 = vmatpush2.msra.mxu0 0.0
    %2683 = vmatprep.subr.mxu0 0.0
    %2684 = vmatpush2.msra.mxu0 0.0
    %2685 = vmatprep.subr.mxu0 0.0
    %2686 = vmatpush2.msra.mxu0 0.0
    %2687 = vmatprep.subr.mxu0 0.0
    %2688 = vmatpush2.msra.mxu0 0.0
    %2689 = vmatprep.subr.mxu0 0.0
    %2690 = vmatpush2.msra.mxu0 0.0
    %2691 = vmatprep.subr.mxu0 0.0
    %2692 = vmatpush2.msra.mxu0 0.0
    %2693 = vmatprep.subr.mxu0 0.0
    %2694 = vmatpush2.msra.mxu0 0.0
    %2695 = vmatprep.mubr.f32.mxu0 0.0
    %2696 = vmatmul.mubr.f32.gmra.mxu0 %v2629
    %v2697 = vpop.f32.mrf.mxu0
    %v2698 = vadd.f32 %v2624, %v2697
    %v2699 = vpop.f32.mrf.mxu0
    %2700 = vdwg.mxu0
    %vm2701 = vcmask 41984
    %2702 = vst.msk [vmem:[#allocation2] sm:$0x3] %vm2701, %v2698
    // Predicated region
    $region34: #{mamba_model.1} parent=1 // pred_check
      _
    $region35: #{mamba_model.1} parent=1 // pred_check_branch
      %2704 = sbr.rel (0) target = $region37
    $region36: #{mamba_model.1} parent=1 // pred_region
      %s2706 = ssub.s32 32, 32
      %2707 = vsyncadd [#allocation3], %s2706
      %s2709 = sshll.u32 [#allocation2], 4
      %s2710 = int_to_ptr.vmem [resolvable:$true] %s2709
      %2712 = dma.vmem_to_hbm [thread:$0]  %s2710, 32, %s8, [#allocation3]
    $region37: #{mamba_model.1} parent=1 // pred_fallthru
      _
    // Predicated region
    $region38: #{mamba_model.1} parent=1 // pred_check
      _
    $region39: #{mamba_model.1} parent=1 // pred_check_branch
      %2714 = sbr.rel (0) target = $region41
    $region40: #{mamba_model.1} parent=1 // pred_region
      %2715 = dma.done [#allocation3], 32
    $region41: #{mamba_model.1} parent=1 // pred_fallthru
      _
    %2716 = vsyncpa [#allocation3], 1

</llo_original>
